<compile_context>
chip_gen: v7x
topology: tpu7x:2x2x1
jax: 0.10.0
libtpu: 0.0.40
codegen_flags: <defaults>
</compile_context>

<pallas_src>
import functools

import jax
import jax.numpy as jnp
from jax.experimental import pallas as pl
from jax.experimental.pallas import tpu as pltpu


def _pick_seq_tile(n):
    """Largest convenient sequence tile that divides n (or the full axis)."""
    for t in (256, 128):
        if n % t == 0:
            return t
    return n  # full axis is always a legal block


# ----------------------------------------------------------------------------
# Kernel A: fused QKV projection, head-split bf16 outputs (B, H, N, hd).
# ----------------------------------------------------------------------------
def _qkv_proj_kernel(x_ref, wqkv_ref, bqkv_ref, q_ref, k_ref, v_ref,
                     *, num_heads, head_dim):
    x = x_ref[0]                                            # (tn, C) bf16
    # Single fused MXU matmul, f32 accumulation; bias (Q rows already pre-scaled).
    qkv = jnp.dot(x, wqkv_ref[...],
                  preferred_element_type=jnp.float32) + bqkv_ref[...]   # (tn, 3D) f32

    D = num_heads * head_dim
    out_refs = (q_ref, k_ref, v_ref)
    for s in range(3):                                      # q, k, v
        base = s * D
        for h in range(num_heads):
            lo = base + h * head_dim
            out_refs[s][0, h] = qkv[:, lo:lo + head_dim].astype(out_refs[s].dtype)


# ----------------------------------------------------------------------------
# Kernel B: flash attention (online softmax, batched heads) + fused output proj.
# ----------------------------------------------------------------------------
def _flash_attn_proj_kernel(q_ref, k_ref, v_ref, wproj_ref, bproj_ref, o_ref,
                            m_sc, l_sc, acc_sc, merged_sc,
                            *, num_heads, head_dim):
    kv_idx = pl.program_id(2)

    @pl.when(kv_idx == 0)
    def _():
        m_sc[...] = jnp.full(m_sc.shape, -jnp.inf, dtype=m_sc.dtype)
        l_sc[...] = jnp.zeros(l_sc.shape, dtype=l_sc.dtype)
        acc_sc[...] = jnp.zeros(acc_sc.shape, dtype=acc_sc.dtype)

    q = q_ref[0]                                            # (H, tq, hd) bf16, pre-scaled
    k = k_ref[0]                                            # (H, tk, hd) bf16
    v = v_ref[0]                                            # (H, tk, hd) bf16

    # Head-batched score matmul, f32 accumulation.
    s = jnp.einsum("hqd,hkd->hqk", q, k,
                   preferred_element_type=jnp.float32)      # (H, tq, tk) f32

    m_prev = m_sc[...]
    m_new = jnp.maximum(m_prev, s.max(axis=-1, keepdims=True))
    alpha = jnp.exp(m_prev - m_new)                         # f32 (EUP)
    p = jnp.exp(s - m_new)                                  # f32

    l_sc[...] = alpha * l_sc[...] + p.sum(axis=-1, keepdims=True)
    acc_sc[...] = alpha * acc_sc[...] + jnp.einsum(
        "hqk,hkd->hqd", p.astype(v.dtype), v,
        preferred_element_type=jnp.float32)                 # (H, tq, hd) f32
    m_sc[...] = m_new

    @pl.when(kv_idx == pl.num_programs(2) - 1)
    def _():
        inv_l = pl.reciprocal(l_sc[...], approx=True)       # (H, tq, 1) f32, EUP vrcp
        # Merge heads into a lane-dense (tq, D) scratch with per-head slice stores
        # (no concatenate, no transpose).
        for h in range(num_heads):
            lo = h * head_dim
            merged_sc[:, lo:lo + head_dim] = acc_sc[h] * inv_l[h]
        # Fused output projection (full-depth MXU matmul) + bias.  norm = Identity.
        y = jnp.dot(merged_sc[...].astype(wproj_ref.dtype), wproj_ref[...],
                    preferred_element_type=jnp.float32) + bproj_ref[...]
        o_ref[0] = y.astype(o_ref.dtype)


# ----------------------------------------------------------------------------
# Wrapper
# ----------------------------------------------------------------------------
@functools.partial(jax.jit, static_argnames=("num_heads",))
def eva_attention(x, wqkv, qkv_bias, wproj, bproj, *, num_heads):
    """x: (B, N, C).  wqkv: (3D, C), qkv_bias: (3D,), wproj: (C, D), bproj: (C,)."""
    B, N, C = x.shape
    D3 = wqkv.shape[0]
    D = D3 // 3
    head_dim = D // num_heads
    scale = head_dim ** -0.5

    # --- one-time weight preprocessing in XLA (hoisted out of the kernels) ---
    # torch (out,in) -> (in,out); fold the attention scale into the Q rows; cast to bf16.
    q_scale = jnp.concatenate([jnp.full((D,), scale, jnp.float32),
                               jnp.ones((2 * D,), jnp.float32)])
    wqkv_t = (jnp.transpose(wqkv).astype(jnp.float32) * q_scale[None, :]
              ).astype(jnp.bfloat16)                                # (C, 3D) bf16
    bqkv = (qkv_bias.astype(jnp.float32) * q_scale).reshape(1, D3)  # (1, 3D) f32
    wproj_t = jnp.transpose(wproj).astype(jnp.bfloat16)             # (D, C) bf16
    bproj_2d = bproj.astype(jnp.float32).reshape(1, C)              # (1, C) f32
    x_bf16 = x.astype(jnp.bfloat16)

    tn = _pick_seq_tile(N)      # projection seq tile
    tq = _pick_seq_tile(N)      # query tile
    tk = _pick_seq_tile(N)      # kv tile

    # ---------------- kernel A: QKV projection ----------------
    qkv_kernel = functools.partial(_qkv_proj_kernel,
                                   num_heads=num_heads, head_dim=head_dim)
    q, k, v = pl.pallas_call(
        qkv_kernel,
        out_shape=[jax.ShapeDtypeStruct((B, num_heads, N, head_dim), jnp.bfloat16)] * 3,
        grid_spec=pltpu.PrefetchScalarGridSpec(
            num_scalar_prefetch=0,
            grid=(B, N // tn),
            in_specs=[
                pl.BlockSpec((1, tn, C), lambda b, n: (b, n, 0)),   # x tile
                pl.BlockSpec((C, D3), lambda b, n: (0, 0)),         # Wqkv (grid-invariant)
                pl.BlockSpec((1, D3), lambda b, n: (0, 0)),         # qkv bias
            ],
            out_specs=[
                pl.BlockSpec((1, num_heads, tn, head_dim), lambda b, n: (b, 0, n, 0)),
            ] * 3,
        ),
        compiler_params=pltpu.CompilerParams(
            dimension_semantics=("parallel", "parallel")),
    )(x_bf16, wqkv_t, bqkv)

    # ---------------- kernel B: flash attention + output projection ----------------
    attn_kernel = functools.partial(_flash_attn_proj_kernel,
                                    num_heads=num_heads, head_dim=head_dim)
    out = pl.pallas_call(
        attn_kernel,
        out_shape=jax.ShapeDtypeStruct((B, N, C), x.dtype),
        grid_spec=pltpu.PrefetchScalarGridSpec(
            num_scalar_prefetch=0,
            grid=(B, N // tq, N // tk),
            in_specs=[
                pl.BlockSpec((1, num_heads, tq, head_dim), lambda b, i, j: (b, 0, i, 0)),
                pl.BlockSpec((1, num_heads, tk, head_dim), lambda b, i, j: (b, 0, j, 0)),
                pl.BlockSpec((1, num_heads, tk, head_dim), lambda b, i, j: (b, 0, j, 0)),
                pl.BlockSpec((D, C), lambda b, i, j: (0, 0)),        # Wproj (grid-invariant)
                pl.BlockSpec((1, C), lambda b, i, j: (0, 0)),        # proj bias
            ],
            out_specs=pl.BlockSpec((1, tq, C), lambda b, i, j: (b, i, 0)),
            scratch_shapes=[
                pltpu.VMEM((num_heads, tq, 1), jnp.float32),         # running max m
                pltpu.VMEM((num_heads, tq, 1), jnp.float32),         # running sum l
                pltpu.VMEM((num_heads, tq, head_dim), jnp.float32),  # output accumulator
                pltpu.VMEM((tq, D), jnp.float32),                    # merged-heads buffer
            ],
        ),
        compiler_params=pltpu.CompilerParams(
            dimension_semantics=("parallel", "parallel", "arbitrary")),
    )(q, k, v, wproj_t, bproj_2d)

    return out


# ----------------------------------------------------------------------------
# Pure-JAX reference mirroring the PyTorch forward (f32).
# ----------------------------------------------------------------------------
def eva_attention_ref(x, wqkv, qkv_bias, wproj, bproj, *, num_heads):
    B, N, C = x.shape
    D = wqkv.shape[0] // 3
    head_dim = D // num_heads
    scale = head_dim ** -0.5

    qkv = x @ wqkv.T + qkv_bias                                    # (B, N, 3D)
    qkv = qkv.reshape(B, N, 3, num_heads, head_dim).transpose(2, 0, 3, 1, 4)
    q, k, v = qkv[0], qkv[1], qkv[2]                               # (B, H, N, hd)

    attn = jnp.einsum("bhqd,bhkd->bhqk", q * scale, k)
    attn = jax.nn.softmax(attn, axis=-1)
    o = jnp.einsum("bhqk,bhkd->bhqd", attn, v)                     # (B, H, N, hd)
    o = o.transpose(0, 2, 1, 3).reshape(B, N, D)
    return o @ wproj.T + bproj


if __name__ == "__main__":
    # Small, deterministic example consistent with the module.
    B, N, C = 2, 16, 32
    num_heads = 4
    head_dim = C // num_heads
    D = num_heads * head_dim

    key = jax.random.PRNGKey(0)
    kx, kw1, kb1q, kb1v, kw2, kb2 = jax.random.split(key, 6)

    x = jax.random.normal(kx, (B, N, C), dtype=jnp.float32)

    # qkv: Linear(dim, 3*all_head_dim, bias=False) weight -> (3D, C)
    wqkv = jax.random.normal(kw1, (3 * D, C), dtype=jnp.float32) * 0.05
    # q_bias / v_bias are Parameters; k_bias is a zero buffer.
    q_bias = jax.random.normal(kb1q, (D,), dtype=jnp.float32) * 0.05
    k_bias = jnp.zeros((D,), dtype=jnp.float32)
    v_bias = jax.random.normal(kb1v, (D,), dtype=jnp.float32) * 0.05
    qkv_bias = jnp.concatenate([q_bias, k_bias, v_bias])           # (3D,)
    # proj: Linear(all_head_dim, dim)
    wproj = jax.random.normal(kw2, (C, D), dtype=jnp.float32) * 0.05
    bproj = jax.random.normal(kb2, (C,), dtype=jnp.float32) * 0.05

    out = eva_attention(x, wqkv, qkv_bias, wproj, bproj, num_heads=num_heads)
    out = jax.block_until_ready(out)

    ref = eva_attention_ref(x, wqkv, qkv_bias, wproj, bproj, num_heads=num_heads)
    assert out.shape == (B, N, C)
    # bf16 matmul inputs + approx reciprocal -> relaxed (but still tight) tolerance.
    max_err = float(jnp.max(jnp.abs(out - ref)))
    assert jnp.allclose(out, ref, atol=2e-2, rtol=2e-2), f"mismatch vs reference: {max_err}"

    # TODO(synk): rope / attn_mask / dropout>0 paths of the module are not exercised
    # (module defaults are None / 0.0) and are not implemented in the kernels.
    print("KERNEL_OK")
</pallas_src>

<mosaic_0001>
module attributes {stable_mosaic.version = 11 : i64} {
  func.func @_qkv_proj_kernel(%arg0: i32, %arg1: i32, %arg2: memref<1x16x32xbf16, #tpu.memory_space<vmem>>, %arg3: memref<32x96xbf16, #tpu.memory_space<vmem>>, %arg4: memref<1x96xf32, #tpu.memory_space<vmem>>, %arg5: memref<1x4x16x8xbf16, #tpu.memory_space<vmem>>, %arg6: memref<1x4x16x8xbf16, #tpu.memory_space<vmem>>, %arg7: memref<1x4x16x8xbf16, #tpu.memory_space<vmem>>) attributes {dimension_semantics = [#tpu.dimension_semantics<parallel>, #tpu.dimension_semantics<parallel>], iteration_bounds = array<i64: 2, 1>, scalar_prefetch = 0 : i64, scratch_operands = 0 : i64, tpu.core_type = #tpu.core_type<tc>, window_params = [{transform_indices = @transform_0, window_bounds = array<i64: 1, 16, 32>}, {pipeline_mode = #tpu.pipeline_mode<synchronous>, transform_indices = @transform_1, window_bounds = array<i64: 32, 96>}, {pipeline_mode = #tpu.pipeline_mode<synchronous>, transform_indices = @transform_2, window_bounds = array<i64: 1, 96>}, {transform_indices = @transform_3, window_bounds = array<i64: 1, 4, 16, 8>}, {transform_indices = @transform_4, window_bounds = array<i64: 1, 4, 16, 8>}, {transform_indices = @transform_5, window_bounds = array<i64: 1, 4, 16, 8>}]} {
    %c0 = arith.constant 0 : index
    %c0_0 = arith.constant 0 : index
    %c0_1 = arith.constant 0 : index
    %0 = vector.load %arg2[%c0, %c0_0, %c0_1] : memref<1x16x32xbf16, #tpu.memory_space<vmem>>, vector<1x16x32xbf16>
    %1 = vector.shape_cast %0 : vector<1x16x32xbf16> to vector<16x32xbf16>
    %c0_2 = arith.constant 0 : index
    %c0_3 = arith.constant 0 : index
    %2 = vector.load %arg3[%c0_2, %c0_3] : memref<32x96xbf16, #tpu.memory_space<vmem>>, vector<32x96xbf16>
    %cst = arith.constant dense<0.000000e+00> : vector<16x96xf32>
    %3 = tpu.matmul %1, %2, %cst {dimension_numbers = #tpu.dot_dimension_numbers<[1], [0], [0], [1], [0, 0, 1, 1], [], []>} : vector<16x32xbf16>, vector<32x96xbf16>, vector<16x96xf32> -> vector<16x96xf32>
    %c0_4 = arith.constant 0 : index
    %c0_5 = arith.constant 0 : index
    %4 = vector.load %arg4[%c0_4, %c0_5] : memref<1x96xf32, #tpu.memory_space<vmem>>, vector<1x96xf32>
    %5 = vector.broadcast %4 : vector<1x96xf32> to vector<16x96xf32>
    %6 = arith.addf %3, %5 : vector<16x96xf32>
    %7 = vector.extract_strided_slice %6 {offsets = [0, 0], sizes = [16, 8], strides = [1, 1]} : vector<16x96xf32> to vector<16x8xf32>
    %8 = arith.truncf %7 : vector<16x8xf32> to vector<16x8xbf16>
    %c0_6 = arith.constant 0 : index
    %c0_7 = arith.constant 0 : index
    %c0_8 = arith.constant 0 : index
    %c0_9 = arith.constant 0 : index
    %9 = vector.load %arg5[%c0_6, %c0_7, %c0_8, %c0_9] : memref<1x4x16x8xbf16, #tpu.memory_space<vmem>>, vector<1x1x16x8xbf16>
    %10 = vector.shape_cast %9 : vector<1x1x16x8xbf16> to vector<16x8xbf16>
    %11 = vector.shape_cast %8 : vector<16x8xbf16> to vector<1x1x16x8xbf16>
    tpu.vector_store %arg5[%c0_6, %c0_7, %c0_8, %c0_9], %11 {strides = array<i32>} : memref<1x4x16x8xbf16, #tpu.memory_space<vmem>>, vector<1x1x16x8xbf16>,
    %12 = vector.extract_strided_slice %6 {offsets = [0, 8], sizes = [16, 8], strides = [1, 1]} : vector<16x96xf32> to vector<16x8xf32>
    %13 = arith.truncf %12 : vector<16x8xf32> to vector<16x8xbf16>
    %c0_10 = arith.constant 0 : index
    %c1 = arith.constant 1 : index
    %c0_11 = arith.constant 0 : index
    %c0_12 = arith.constant 0 : index
    %14 = vector.load %arg5[%c0_10, %c1, %c0_11, %c0_12] : memref<1x4x16x8xbf16, #tpu.memory_space<vmem>>, vector<1x1x16x8xbf16>
    %15 = vector.shape_cast %14 : vector<1x1x16x8xbf16> to vector<16x8xbf16>
    %16 = vector.shape_cast %13 : vector<16x8xbf16> to vector<1x1x16x8xbf16>
    tpu.vector_store %arg5[%c0_10, %c1, %c0_11, %c0_12], %16 {strides = array<i32>} : memref<1x4x16x8xbf16, #tpu.memory_space<vmem>>, vector<1x1x16x8xbf16>,
    %17 = vector.extract_strided_slice %6 {offsets = [0, 16], sizes = [16, 8], strides = [1, 1]} : vector<16x96xf32> to vector<16x8xf32>
    %18 = arith.truncf %17 : vector<16x8xf32> to vector<16x8xbf16>
    %c0_13 = arith.constant 0 : index
    %c2 = arith.constant 2 : index
    %c0_14 = arith.constant 0 : index
    %c0_15 = arith.constant 0 : index
    %19 = vector.load %arg5[%c0_13, %c2, %c0_14, %c0_15] : memref<1x4x16x8xbf16, #tpu.memory_space<vmem>>, vector<1x1x16x8xbf16>
    %20 = vector.shape_cast %19 : vector<1x1x16x8xbf16> to vector<16x8xbf16>
    %21 = vector.shape_cast %18 : vector<16x8xbf16> to vector<1x1x16x8xbf16>
    tpu.vector_store %arg5[%c0_13, %c2, %c0_14, %c0_15], %21 {strides = array<i32>} : memref<1x4x16x8xbf16, #tpu.memory_space<vmem>>, vector<1x1x16x8xbf16>,
    %22 = vector.extract_strided_slice %6 {offsets = [0, 24], sizes = [16, 8], strides = [1, 1]} : vector<16x96xf32> to vector<16x8xf32>
    %23 = arith.truncf %22 : vector<16x8xf32> to vector<16x8xbf16>
    %c0_16 = arith.constant 0 : index
    %c3 = arith.constant 3 : index
    %c0_17 = arith.constant 0 : index
    %c0_18 = arith.constant 0 : index
    %24 = vector.load %arg5[%c0_16, %c3, %c0_17, %c0_18] : memref<1x4x16x8xbf16, #tpu.memory_space<vmem>>, vector<1x1x16x8xbf16>
    %25 = vector.shape_cast %24 : vector<1x1x16x8xbf16> to vector<16x8xbf16>
    %26 = vector.shape_cast %23 : vector<16x8xbf16> to vector<1x1x16x8xbf16>
    tpu.vector_store %arg5[%c0_16, %c3, %c0_17, %c0_18], %26 {strides = array<i32>} : memref<1x4x16x8xbf16, #tpu.memory_space<vmem>>, vector<1x1x16x8xbf16>,
    %27 = vector.extract_strided_slice %6 {offsets = [0, 32], sizes = [16, 8], strides = [1, 1]} : vector<16x96xf32> to vector<16x8xf32>
    %28 = arith.truncf %27 : vector<16x8xf32> to vector<16x8xbf16>
    %c0_19 = arith.constant 0 : index
    %c0_20 = arith.constant 0 : index
    %c0_21 = arith.constant 0 : index
    %c0_22 = arith.constant 0 : index
    %29 = vector.load %arg6[%c0_19, %c0_20, %c0_21, %c0_22] : memref<1x4x16x8xbf16, #tpu.memory_space<vmem>>, vector<1x1x16x8xbf16>
    %30 = vector.shape_cast %29 : vector<1x1x16x8xbf16> to vector<16x8xbf16>
    %31 = vector.shape_cast %28 : vector<16x8xbf16> to vector<1x1x16x8xbf16>
    tpu.vector_store %arg6[%c0_19, %c0_20, %c0_21, %c0_22], %31 {strides = array<i32>} : memref<1x4x16x8xbf16, #tpu.memory_space<vmem>>, vector<1x1x16x8xbf16>,
    %32 = vector.extract_strided_slice %6 {offsets = [0, 40], sizes = [16, 8], strides = [1, 1]} : vector<16x96xf32> to vector<16x8xf32>
    %33 = arith.truncf %32 : vector<16x8xf32> to vector<16x8xbf16>
    %c0_23 = arith.constant 0 : index
    %c1_24 = arith.constant 1 : index
    %c0_25 = arith.constant 0 : index
    %c0_26 = arith.constant 0 : index
    %34 = vector.load %arg6[%c0_23, %c1_24, %c0_25, %c0_26] : memref<1x4x16x8xbf16, #tpu.memory_space<vmem>>, vector<1x1x16x8xbf16>
    %35 = vector.shape_cast %34 : vector<1x1x16x8xbf16> to vector<16x8xbf16>
    %36 = vector.shape_cast %33 : vector<16x8xbf16> to vector<1x1x16x8xbf16>
    tpu.vector_store %arg6[%c0_23, %c1_24, %c0_25, %c0_26], %36 {strides = array<i32>} : memref<1x4x16x8xbf16, #tpu.memory_space<vmem>>, vector<1x1x16x8xbf16>,
    %37 = vector.extract_strided_slice %6 {offsets = [0, 48], sizes = [16, 8], strides = [1, 1]} : vector<16x96xf32> to vector<16x8xf32>
    %38 = arith.truncf %37 : vector<16x8xf32> to vector<16x8xbf16>
    %c0_27 = arith.constant 0 : index
    %c2_28 = arith.constant 2 : index
    %c0_29 = arith.constant 0 : index
    %c0_30 = arith.constant 0 : index
    %39 = vector.load %arg6[%c0_27, %c2_28, %c0_29, %c0_30] : memref<1x4x16x8xbf16, #tpu.memory_space<vmem>>, vector<1x1x16x8xbf16>
    %40 = vector.shape_cast %39 : vector<1x1x16x8xbf16> to vector<16x8xbf16>
    %41 = vector.shape_cast %38 : vector<16x8xbf16> to vector<1x1x16x8xbf16>
    tpu.vector_store %arg6[%c0_27, %c2_28, %c0_29, %c0_30], %41 {strides = array<i32>} : memref<1x4x16x8xbf16, #tpu.memory_space<vmem>>, vector<1x1x16x8xbf16>,
    %42 = vector.extract_strided_slice %6 {offsets = [0, 56], sizes = [16, 8], strides = [1, 1]} : vector<16x96xf32> to vector<16x8xf32>
    %43 = arith.truncf %42 : vector<16x8xf32> to vector<16x8xbf16>
    %c0_31 = arith.constant 0 : index
    %c3_32 = arith.constant 3 : index
    %c0_33 = arith.constant 0 : index
    %c0_34 = arith.constant 0 : index
    %44 = vector.load %arg6[%c0_31, %c3_32, %c0_33, %c0_34] : memref<1x4x16x8xbf16, #tpu.memory_space<vmem>>, vector<1x1x16x8xbf16>
    %45 = vector.shape_cast %44 : vector<1x1x16x8xbf16> to vector<16x8xbf16>
    %46 = vector.shape_cast %43 : vector<16x8xbf16> to vector<1x1x16x8xbf16>
    tpu.vector_store %arg6[%c0_31, %c3_32, %c0_33, %c0_34], %46 {strides = array<i32>} : memref<1x4x16x8xbf16, #tpu.memory_space<vmem>>, vector<1x1x16x8xbf16>,
    %47 = vector.extract_strided_slice %6 {offsets = [0, 64], sizes = [16, 8], strides = [1, 1]} : vector<16x96xf32> to vector<16x8xf32>
    %48 = arith.truncf %47 : vector<16x8xf32> to vector<16x8xbf16>
    %c0_35 = arith.constant 0 : index
    %c0_36 = arith.constant 0 : index
    %c0_37 = arith.constant 0 : index
    %c0_38 = arith.constant 0 : index
    %49 = vector.load %arg7[%c0_35, %c0_36, %c0_37, %c0_38] : memref<1x4x16x8xbf16, #tpu.memory_space<vmem>>, vector<1x1x16x8xbf16>
    %50 = vector.shape_cast %49 : vector<1x1x16x8xbf16> to vector<16x8xbf16>
    %51 = vector.shape_cast %48 : vector<16x8xbf16> to vector<1x1x16x8xbf16>
    tpu.vector_store %arg7[%c0_35, %c0_36, %c0_37, %c0_38], %51 {strides = array<i32>} : memref<1x4x16x8xbf16, #tpu.memory_space<vmem>>, vector<1x1x16x8xbf16>,
    %52 = vector.extract_strided_slice %6 {offsets = [0, 72], sizes = [16, 8], strides = [1, 1]} : vector<16x96xf32> to vector<16x8xf32>
    %53 = arith.truncf %52 : vector<16x8xf32> to vector<16x8xbf16>
    %c0_39 = arith.constant 0 : index
    %c1_40 = arith.constant 1 : index
    %c0_41 = arith.constant 0 : index
    %c0_42 = arith.constant 0 : index
    %54 = vector.load %arg7[%c0_39, %c1_40, %c0_41, %c0_42] : memref<1x4x16x8xbf16, #tpu.memory_space<vmem>>, vector<1x1x16x8xbf16>
    %55 = vector.shape_cast %54 : vector<1x1x16x8xbf16> to vector<16x8xbf16>
    %56 = vector.shape_cast %53 : vector<16x8xbf16> to vector<1x1x16x8xbf16>
    tpu.vector_store %arg7[%c0_39, %c1_40, %c0_41, %c0_42], %56 {strides = array<i32>} : memref<1x4x16x8xbf16, #tpu.memory_space<vmem>>, vector<1x1x16x8xbf16>,
    %57 = vector.extract_strided_slice %6 {offsets = [0, 80], sizes = [16, 8], strides = [1, 1]} : vector<16x96xf32> to vector<16x8xf32>
    %58 = arith.truncf %57 : vector<16x8xf32> to vector<16x8xbf16>
    %c0_43 = arith.constant 0 : index
    %c2_44 = arith.constant 2 : index
    %c0_45 = arith.constant 0 : index
    %c0_46 = arith.constant 0 : index
    %59 = vector.load %arg7[%c0_43, %c2_44, %c0_45, %c0_46] : memref<1x4x16x8xbf16, #tpu.memory_space<vmem>>, vector<1x1x16x8xbf16>
    %60 = vector.shape_cast %59 : vector<1x1x16x8xbf16> to vector<16x8xbf16>
    %61 = vector.shape_cast %58 : vector<16x8xbf16> to vector<1x1x16x8xbf16>
    tpu.vector_store %arg7[%c0_43, %c2_44, %c0_45, %c0_46], %61 {strides = array<i32>} : memref<1x4x16x8xbf16, #tpu.memory_space<vmem>>, vector<1x1x16x8xbf16>,
    %62 = vector.extract_strided_slice %6 {offsets = [0, 88], sizes = [16, 8], strides = [1, 1]} : vector<16x96xf32> to vector<16x8xf32>
    %63 = arith.truncf %62 : vector<16x8xf32> to vector<16x8xbf16>
    %c0_47 = arith.constant 0 : index
    %c3_48 = arith.constant 3 : index
    %c0_49 = arith.constant 0 : index
    %c0_50 = arith.constant 0 : index
    %64 = vector.load %arg7[%c0_47, %c3_48, %c0_49, %c0_50] : memref<1x4x16x8xbf16, #tpu.memory_space<vmem>>, vector<1x1x16x8xbf16>
    %65 = vector.shape_cast %64 : vector<1x1x16x8xbf16> to vector<16x8xbf16>
    %66 = vector.shape_cast %63 : vector<16x8xbf16> to vector<1x1x16x8xbf16>
    tpu.vector_store %arg7[%c0_47, %c3_48, %c0_49, %c0_50], %66 {strides = array<i32>} : memref<1x4x16x8xbf16, #tpu.memory_space<vmem>>, vector<1x1x16x8xbf16>,
    return
  }
  func.func @transform_0(%arg0: i32, %arg1: i32) -> (i32, i32, i32) {
    %c0_i32 = arith.constant 0 : i32
    %c0_i32_0 = arith.constant 0 : i32
    return %arg0, %arg1, %c0_i32 : i32, i32, i32
  }
  func.func @transform_1(%arg0: i32, %arg1: i32) -> (i32, i32) {
    %c0_i32 = arith.constant 0 : i32
    %c0_i32_0 = arith.constant 0 : i32
    %c0_i32_1 = arith.constant 0 : i32
    return %c0_i32, %c0_i32_0 : i32, i32
  }
  func.func @transform_2(%arg0: i32, %arg1: i32) -> (i32, i32) {
    %c0_i32 = arith.constant 0 : i32
    %c0_i32_0 = arith.constant 0 : i32
    %c0_i32_1 = arith.constant 0 : i32
    return %c0_i32, %c0_i32_0 : i32, i32
  }
  func.func @transform_3(%arg0: i32, %arg1: i32) -> (i32, i32, i32, i32) {
    %c0_i32 = arith.constant 0 : i32
    %c0_i32_0 = arith.constant 0 : i32
    %c0_i32_1 = arith.constant 0 : i32
    return %arg0, %c0_i32, %arg1, %c0_i32_0 : i32, i32, i32, i32
  }
  func.func @transform_4(%arg0: i32, %arg1: i32) -> (i32, i32, i32, i32) {
    %c0_i32 = arith.constant 0 : i32
    %c0_i32_0 = arith.constant 0 : i32
    %c0_i32_1 = arith.constant 0 : i32
    return %arg0, %c0_i32, %arg1, %c0_i32_0 : i32, i32, i32, i32
  }
  func.func @transform_5(%arg0: i32, %arg1: i32) -> (i32, i32, i32, i32) {
    %c0_i32 = arith.constant 0 : i32
    %c0_i32_0 = arith.constant 0 : i32
    %c0_i32_1 = arith.constant 0 : i32
    return %arg0, %c0_i32, %arg1, %c0_i32_0 : i32, i32, i32, i32
  }
}

module attributes {stable_mosaic.version = 11 : i64} {
  func.func @_flash_attn_proj_kernel(%arg0: i32, %arg1: i32, %arg2: i32, %arg3: memref<1x4x16x8xbf16, #tpu.memory_space<vmem>>, %arg4: memref<1x4x16x8xbf16, #tpu.memory_space<vmem>>, %arg5: memref<1x4x16x8xbf16, #tpu.memory_space<vmem>>, %arg6: memref<32x32xbf16, #tpu.memory_space<vmem>>, %arg7: memref<1x32xf32, #tpu.memory_space<vmem>>, %arg8: memref<1x16x32xf32, #tpu.memory_space<vmem>>, %arg9: memref<4x16x1xf32, #tpu.memory_space<vmem>>, %arg10: memref<4x16x1xf32, #tpu.memory_space<vmem>>, %arg11: memref<4x16x8xf32, #tpu.memory_space<vmem>>, %arg12: memref<16x32xf32, #tpu.memory_space<vmem>>) attributes {dimension_semantics = [#tpu.dimension_semantics<parallel>, #tpu.dimension_semantics<parallel>, #tpu.dimension_semantics<arbitrary>], iteration_bounds = array<i64: 2, 1, 1>, scalar_prefetch = 0 : i64, scratch_operands = 4 : i64, tpu.core_type = #tpu.core_type<tc>, window_params = [{transform_indices = @transform_0, window_bounds = array<i64: 1, 4, 16, 8>}, {transform_indices = @transform_1, window_bounds = array<i64: 1, 4, 16, 8>}, {transform_indices = @transform_2, window_bounds = array<i64: 1, 4, 16, 8>}, {pipeline_mode = #tpu.pipeline_mode<synchronous>, transform_indices = @transform_3, window_bounds = array<i64: 32, 32>}, {pipeline_mode = #tpu.pipeline_mode<synchronous>, transform_indices = @transform_4, window_bounds = array<i64: 1, 32>}, {transform_indices = @transform_5, window_bounds = array<i64: 1, 16, 32>}]} {
    %c0_i32 = arith.constant 0 : i32
    %0 = arith.cmpi eq, %arg2, %c0_i32 : i32
    %1 = arith.extui %0 : i1 to i32
    %c0_i32_0 = arith.constant 0 : i32
    %2 = arith.cmpi ne, %1, %c0_i32_0 : i32
    scf.if %2 {
      %cst_35 = arith.constant 0xFF800000 : f32
      %36 = vector.broadcast %cst_35 : f32 to vector<4x16x1xf32>
      %c0_36 = arith.constant 0 : index
      %c0_37 = arith.constant 0 : index
      %c0_38 = arith.constant 0 : index
      %37 = vector.load %arg9[%c0_36, %c0_37, %c0_38] : memref<4x16x1xf32, #tpu.memory_space<vmem>>, vector<4x16x1xf32>
      tpu.vector_store %arg9[%c0_36, %c0_37, %c0_38], %36 {strides = array<i32>} : memref<4x16x1xf32, #tpu.memory_space<vmem>>, vector<4x16x1xf32>,
      %cst_39 = arith.constant 0.000000e+00 : f32
      %38 = vector.broadcast %cst_39 : f32 to vector<4x16x1xf32>
      %c0_40 = arith.constant 0 : index
      %c0_41 = arith.constant 0 : index
      %c0_42 = arith.constant 0 : index
      %39 = vector.load %arg10[%c0_40, %c0_41, %c0_42] : memref<4x16x1xf32, #tpu.memory_space<vmem>>, vector<4x16x1xf32>
      tpu.vector_store %arg10[%c0_40, %c0_41, %c0_42], %38 {strides = array<i32>} : memref<4x16x1xf32, #tpu.memory_space<vmem>>, vector<4x16x1xf32>,
      %cst_43 = arith.constant 0.000000e+00 : f32
      %40 = vector.broadcast %cst_43 : f32 to vector<4x16x8xf32>
      %c0_44 = arith.constant 0 : index
      %c0_45 = arith.constant 0 : index
      %c0_46 = arith.constant 0 : index
      %41 = vector.load %arg11[%c0_44, %c0_45, %c0_46] : memref<4x16x8xf32, #tpu.memory_space<vmem>>, vector<4x16x8xf32>
      tpu.vector_store %arg11[%c0_44, %c0_45, %c0_46], %40 {strides = array<i32>} : memref<4x16x8xf32, #tpu.memory_space<vmem>>, vector<4x16x8xf32>,
    } else {
    }
    %c0 = arith.constant 0 : index
    %c0_1 = arith.constant 0 : index
    %c0_2 = arith.constant 0 : index
    %c0_3 = arith.constant 0 : index
    %3 = vector.load %arg3[%c0, %c0_1, %c0_2, %c0_3] : memref<1x4x16x8xbf16, #tpu.memory_space<vmem>>, vector<1x4x16x8xbf16>
    %4 = vector.shape_cast %3 : vector<1x4x16x8xbf16> to vector<4x16x8xbf16>
    %c0_4 = arith.constant 0 : index
    %c0_5 = arith.constant 0 : index
    %c0_6 = arith.constant 0 : index
    %c0_7 = arith.constant 0 : index
    %5 = vector.load %arg4[%c0_4, %c0_5, %c0_6, %c0_7] : memref<1x4x16x8xbf16, #tpu.memory_space<vmem>>, vector<1x4x16x8xbf16>
    %6 = vector.shape_cast %5 : vector<1x4x16x8xbf16> to vector<4x16x8xbf16>
    %c0_8 = arith.constant 0 : index
    %c0_9 = arith.constant 0 : index
    %c0_10 = arith.constant 0 : index
    %c0_11 = arith.constant 0 : index
    %7 = vector.load %arg5[%c0_8, %c0_9, %c0_10, %c0_11] : memref<1x4x16x8xbf16, #tpu.memory_space<vmem>>, vector<1x4x16x8xbf16>
    %8 = vector.shape_cast %7 : vector<1x4x16x8xbf16> to vector<4x16x8xbf16>
    "tpu.trace_start"() <{level = 10 : i32, message = "hqd,hkd->hqk"}> : () -> ()
    %cst = arith.constant dense<0.000000e+00> : vector<4x16x16xf32>
    %9 = tpu.matmul %4, %6, %cst {dimension_numbers = #tpu.dot_dimension_numbers<[2], [2], [1], [1], [0, 0, 0, 1, 1, 1], [0], [0]>} : vector<4x16x8xbf16>, vector<4x16x8xbf16>, vector<4x16x16xf32> -> vector<4x16x16xf32>
    "tpu.trace_stop"() : () -> ()
    %c0_12 = arith.constant 0 : index
    %c0_13 = arith.constant 0 : index
    %c0_14 = arith.constant 0 : index
    %10 = vector.load %arg9[%c0_12, %c0_13, %c0_14] : memref<4x16x1xf32, #tpu.memory_space<vmem>>, vector<4x16x1xf32>
    %cst_15 = arith.constant dense<0xFF800000> : vector<4x16xf32>
    %11 = vector.multi_reduction <maximumf>, %9, %cst_15 [2] : vector<4x16x16xf32> to vector<4x16xf32>
    %12 = vector.shape_cast %11 : vector<4x16xf32> to vector<4x16x1xf32>
    %13 = arith.maximumf %10, %12 : vector<4x16x1xf32>
    %14 = arith.subf %10, %13 : vector<4x16x1xf32>
    %15 = math.exp %14 : vector<4x16x1xf32>
    %16 = vector.broadcast %13 : vector<4x16x1xf32> to vector<4x16x16xf32>
    %17 = arith.subf %9, %16 : vector<4x16x16xf32>
    %18 = math.exp %17 : vector<4x16x16xf32>
    %c0_16 = arith.constant 0 : index
    %c0_17 = arith.constant 0 : index
    %c0_18 = arith.constant 0 : index
    %19 = vector.load %arg10[%c0_16, %c0_17, %c0_18] : memref<4x16x1xf32, #tpu.memory_space<vmem>>, vector<4x16x1xf32>
    %20 = arith.mulf %15, %19 : vector<4x16x1xf32>
    %cst_19 = arith.constant dense<0.000000e+00> : vector<4x16xf32>
    %21 = vector.multi_reduction <add>, %18, %cst_19 [2] : vector<4x16x16xf32> to vector<4x16xf32>
    %22 = vector.shape_cast %21 : vector<4x16xf32> to vector<4x16x1xf32>
    %23 = arith.addf %20, %22 : vector<4x16x1xf32>
    %c0_20 = arith.constant 0 : index
    %c0_21 = arith.constant 0 : index
    %c0_22 = arith.constant 0 : index
    %24 = vector.load %arg10[%c0_20, %c0_21, %c0_22] : memref<4x16x1xf32, #tpu.memory_space<vmem>>, vector<4x16x1xf32>
    tpu.vector_store %arg10[%c0_20, %c0_21, %c0_22], %23 {strides = array<i32>} : memref<4x16x1xf32, #tpu.memory_space<vmem>>, vector<4x16x1xf32>,
    %c0_23 = arith.constant 0 : index
    %c0_24 = arith.constant 0 : index
    %c0_25 = arith.constant 0 : index
    %25 = vector.load %arg11[%c0_23, %c0_24, %c0_25] : memref<4x16x8xf32, #tpu.memory_space<vmem>>, vector<4x16x8xf32>
    %26 = vector.broadcast %15 : vector<4x16x1xf32> to vector<4x16x8xf32>
    %27 = arith.mulf %26, %25 : vector<4x16x8xf32>
    %28 = arith.truncf %18 : vector<4x16x16xf32> to vector<4x16x16xbf16>
    "tpu.trace_start"() <{level = 10 : i32, message = "hqk,hkd->hqd"}> : () -> ()
    %cst_26 = arith.constant dense<0.000000e+00> : vector<4x16x8xf32>
    %29 = tpu.matmul %28, %8, %cst_26 {dimension_numbers = #tpu.dot_dimension_numbers<[2], [1], [1], [2], [0, 0, 0, 1, 1, 2], [0], [0]>} : vector<4x16x16xbf16>, vector<4x16x8xbf16>, vector<4x16x8xf32> -> vector<4x16x8xf32>
    "tpu.trace_stop"() : () -> ()
    %30 = arith.addf %27, %29 : vector<4x16x8xf32>
    %c0_27 = arith.constant 0 : index
    %c0_28 = arith.constant 0 : index
    %c0_29 = arith.constant 0 : index
    %31 = vector.load %arg11[%c0_27, %c0_28, %c0_29] : memref<4x16x8xf32, #tpu.memory_space<vmem>>, vector<4x16x8xf32>
    tpu.vector_store %arg11[%c0_27, %c0_28, %c0_29], %30 {strides = array<i32>} : memref<4x16x8xf32, #tpu.memory_space<vmem>>, vector<4x16x8xf32>,
    %c0_30 = arith.constant 0 : index
    %c0_31 = arith.constant 0 : index
    %c0_32 = arith.constant 0 : index
    %32 = vector.load %arg9[%c0_30, %c0_31, %c0_32] : memref<4x16x1xf32, #tpu.memory_space<vmem>>, vector<4x16x1xf32>
    tpu.vector_store %arg9[%c0_30, %c0_31, %c0_32], %13 {strides = array<i32>} : memref<4x16x1xf32, #tpu.memory_space<vmem>>, vector<4x16x1xf32>,
    %c0_i32_33 = arith.constant 0 : i32
    %33 = arith.cmpi eq, %arg2, %c0_i32_33 : i32
    %34 = arith.extui %33 : i1 to i32
    %c0_i32_34 = arith.constant 0 : i32
    %35 = arith.cmpi ne, %34, %c0_i32_34 : i32
    scf.if %35 {
      %c0_35 = arith.constant 0 : index
      %c0_36 = arith.constant 0 : index
      %c0_37 = arith.constant 0 : index
      %36 = vector.load %arg10[%c0_35, %c0_36, %c0_37] : memref<4x16x1xf32, #tpu.memory_space<vmem>>, vector<4x16x1xf32>
      %37 = tpu.reciprocal %36 {approx = true} : vector<4x16x1xf32> -> vector<4x16x1xf32>
      %c0_38 = arith.constant 0 : index
      %c0_39 = arith.constant 0 : index
      %c0_40 = arith.constant 0 : index
      %38 = vector.load %arg11[%c0_38, %c0_39, %c0_40] : memref<4x16x8xf32, #tpu.memory_space<vmem>>, vector<1x16x8xf32>
      %39 = vector.shape_cast %38 : vector<1x16x8xf32> to vector<16x8xf32>
      %40 = vector.extract_strided_slice %37 {offsets = [0, 0, 0], sizes = [1, 16, 1], strides = [1, 1, 1]} : vector<4x16x1xf32> to vector<1x16x1xf32>
      %41 = vector.shape_cast %40 : vector<1x16x1xf32> to vector<16x1xf32>
      %42 = vector.broadcast %41 : vector<16x1xf32> to vector<16x8xf32>
      %43 = arith.mulf %39, %42 : vector<16x8xf32>
      %c0_41 = arith.constant 0 : index
      %c0_42 = arith.constant 0 : index
      %44 = vector.load %arg12[%c0_41, %c0_42] : memref<16x32xf32, #tpu.memory_space<vmem>>, vector<16x8xf32>
      tpu.vector_store %arg12[%c0_41, %c0_42], %43 {strides = array<i32>} : memref<16x32xf32, #tpu.memory_space<vmem>>, vector<16x8xf32>,
      %c1 = arith.constant 1 : index
      %c0_43 = arith.constant 0 : index
      %c0_44 = arith.constant 0 : index
      %45 = vector.load %arg11[%c1, %c0_43, %c0_44] : memref<4x16x8xf32, #tpu.memory_space<vmem>>, vector<1x16x8xf32>
      %46 = vector.shape_cast %45 : vector<1x16x8xf32> to vector<16x8xf32>
      %47 = vector.extract_strided_slice %37 {offsets = [1, 0, 0], sizes = [1, 16, 1], strides = [1, 1, 1]} : vector<4x16x1xf32> to vector<1x16x1xf32>
      %48 = vector.shape_cast %47 : vector<1x16x1xf32> to vector<16x1xf32>
      %49 = vector.broadcast %48 : vector<16x1xf32> to vector<16x8xf32>
      %50 = arith.mulf %46, %49 : vector<16x8xf32>
      %c0_45 = arith.constant 0 : index
      %c8 = arith.constant 8 : index
      %51 = vector.load %arg12[%c0_45, %c8] : memref<16x32xf32, #tpu.memory_space<vmem>>, vector<16x8xf32>
      tpu.vector_store %arg12[%c0_45, %c8], %50 {strides = array<i32>} : memref<16x32xf32, #tpu.memory_space<vmem>>, vector<16x8xf32>,
      %c2 = arith.constant 2 : index
      %c0_46 = arith.constant 0 : index
      %c0_47 = arith.constant 0 : index
      %52 = vector.load %arg11[%c2, %c0_46, %c0_47] : memref<4x16x8xf32, #tpu.memory_space<vmem>>, vector<1x16x8xf32>
      %53 = vector.shape_cast %52 : vector<1x16x8xf32> to vector<16x8xf32>
      %54 = vector.extract_strided_slice %37 {offsets = [2, 0, 0], sizes = [1, 16, 1], strides = [1, 1, 1]} : vector<4x16x1xf32> to vector<1x16x1xf32>
      %55 = vector.shape_cast %54 : vector<1x16x1xf32> to vector<16x1xf32>
      %56 = vector.broadcast %55 : vector<16x1xf32> to vector<16x8xf32>
      %57 = arith.mulf %53, %56 : vector<16x8xf32>
      %c0_48 = arith.constant 0 : index
      %c16 = arith.constant 16 : index
      %58 = vector.load %arg12[%c0_48, %c16] : memref<16x32xf32, #tpu.memory_space<vmem>>, vector<16x8xf32>
      tpu.vector_store %arg12[%c0_48, %c16], %57 {strides = array<i32>} : memref<16x32xf32, #tpu.memory_space<vmem>>, vector<16x8xf32>,
      %c3 = arith.constant 3 : index
      %c0_49 = arith.constant 0 : index
      %c0_50 = arith.constant 0 : index
      %59 = vector.load %arg11[%c3, %c0_49, %c0_50] : memref<4x16x8xf32, #tpu.memory_space<vmem>>, vector<1x16x8xf32>
      %60 = vector.shape_cast %59 : vector<1x16x8xf32> to vector<16x8xf32>
      %61 = vector.extract_strided_slice %37 {offsets = [3, 0, 0], sizes = [1, 16, 1], strides = [1, 1, 1]} : vector<4x16x1xf32> to vector<1x16x1xf32>
      %62 = vector.shape_cast %61 : vector<1x16x1xf32> to vector<16x1xf32>
      %63 = vector.broadcast %62 : vector<16x1xf32> to vector<16x8xf32>
      %64 = arith.mulf %60, %63 : vector<16x8xf32>
      %c0_51 = arith.constant 0 : index
      %c24 = arith.constant 24 : index
      %65 = vector.load %arg12[%c0_51, %c24] : memref<16x32xf32, #tpu.memory_space<vmem>>, vector<16x8xf32>
      tpu.vector_store %arg12[%c0_51, %c24], %64 {strides = array<i32>} : memref<16x32xf32, #tpu.memory_space<vmem>>, vector<16x8xf32>,
      %c0_52 = arith.constant 0 : index
      %c0_53 = arith.constant 0 : index
      %66 = vector.load %arg12[%c0_52, %c0_53] : memref<16x32xf32, #tpu.memory_space<vmem>>, vector<16x32xf32>
      %67 = arith.truncf %66 : vector<16x32xf32> to vector<16x32xbf16>
      %c0_54 = arith.constant 0 : index
      %c0_55 = arith.constant 0 : index
      %68 = vector.load %arg6[%c0_54, %c0_55] : memref<32x32xbf16, #tpu.memory_space<vmem>>, vector<32x32xbf16>
      %cst_56 = arith.constant dense<0.000000e+00> : vector<16x32xf32>
      %69 = tpu.matmul %67, %68, %cst_56 {dimension_numbers = #tpu.dot_dimension_numbers<[1], [0], [0], [1], [0, 0, 1, 1], [], []>} : vector<16x32xbf16>, vector<32x32xbf16>, vector<16x32xf32> -> vector<16x32xf32>
      %c0_57 = arith.constant 0 : index
      %c0_58 = arith.constant 0 : index
      %70 = vector.load %arg7[%c0_57, %c0_58] : memref<1x32xf32, #tpu.memory_space<vmem>>, vector<1x32xf32>
      %71 = vector.broadcast %70 : vector<1x32xf32> to vector<16x32xf32>
      %72 = arith.addf %69, %71 : vector<16x32xf32>
      %c0_59 = arith.constant 0 : index
      %c0_60 = arith.constant 0 : index
      %c0_61 = arith.constant 0 : index
      %73 = vector.load %arg8[%c0_59, %c0_60, %c0_61] : memref<1x16x32xf32, #tpu.memory_space<vmem>>, vector<1x16x32xf32>
      %74 = vector.shape_cast %73 : vector<1x16x32xf32> to vector<16x32xf32>
      %75 = vector.shape_cast %72 : vector<16x32xf32> to vector<1x16x32xf32>
      tpu.vector_store %arg8[%c0_59, %c0_60, %c0_61], %75 {strides = array<i32>} : memref<1x16x32xf32, #tpu.memory_space<vmem>>, vector<1x16x32xf32>,
    } else {
    }
    return
  }
  func.func @transform_0(%arg0: i32, %arg1: i32, %arg2: i32) -> (i32, i32, i32, i32) {
    %c0_i32 = arith.constant 0 : i32
    %c0_i32_0 = arith.constant 0 : i32
    %c0_i32_1 = arith.constant 0 : i32
    return %arg0, %c0_i32, %arg1, %c0_i32_0 : i32, i32, i32, i32
  }
  func.func @transform_1(%arg0: i32, %arg1: i32, %arg2: i32) -> (i32, i32, i32, i32) {
    %c0_i32 = arith.constant 0 : i32
    %c0_i32_0 = arith.constant 0 : i32
    %c0_i32_1 = arith.constant 0 : i32
    return %arg0, %c0_i32, %arg2, %c0_i32_0 : i32, i32, i32, i32
  }
  func.func @transform_2(%arg0: i32, %arg1: i32, %arg2: i32) -> (i32, i32, i32, i32) {
    %c0_i32 = arith.constant 0 : i32
    %c0_i32_0 = arith.constant 0 : i32
    %c0_i32_1 = arith.constant 0 : i32
    return %arg0, %c0_i32, %arg2, %c0_i32_0 : i32, i32, i32, i32
  }
  func.func @transform_3(%arg0: i32, %arg1: i32, %arg2: i32) -> (i32, i32) {
    %c0_i32 = arith.constant 0 : i32
    %c0_i32_0 = arith.constant 0 : i32
    %c0_i32_1 = arith.constant 0 : i32
    return %c0_i32, %c0_i32_0 : i32, i32
  }
  func.func @transform_4(%arg0: i32, %arg1: i32, %arg2: i32) -> (i32, i32) {
    %c0_i32 = arith.constant 0 : i32
    %c0_i32_0 = arith.constant 0 : i32
    %c0_i32_1 = arith.constant 0 : i32
    return %c0_i32, %c0_i32_0 : i32, i32
  }
  func.func @transform_5(%arg0: i32, %arg1: i32, %arg2: i32) -> (i32, i32, i32) {
    %c0_i32 = arith.constant 0 : i32
    %c0_i32_0 = arith.constant 0 : i32
    return %arg0, %arg1, %c0_i32 : i32, i32, i32
  }
}

</mosaic_0001>

<llo_original>
// kernel: eva_attention.2
$region0: #{eva_attention.2}
  #allocation0 [shape = 'u32[]', space=smem, size = 0x4, offset = 0x4, fixed_abs, tag = 'smem constant byte address 0x4 - core index']
  #allocation1 [shape = 'u32[144,128]{1,0:T(1,128)}', space=vmem, size = 0x12000, scoped, tag = 'internal scratch']
  %s0 = inlined_call_operand.vmem [shape: bf16[2,16,32], index: 0, kind: input, shape index: {}]
  %s1 = inlined_call_operand.vmem [shape: bf16[32,96], index: 1, kind: input, shape index: {}]
  %s2 = inlined_call_operand.vmem [shape: f32[1,96], index: 2, kind: input, shape index: {}]
  %s3 = inlined_call_operand.vmem [shape: bf16[2,4,16,8], index: 3, kind: output, shape index: {0}]
  %s4 = inlined_call_operand.vmem [shape: bf16[2,4,16,8], index: 4, kind: output, shape index: {1}]
  %s5 = inlined_call_operand.vmem [shape: bf16[2,4,16,8], index: 5, kind: output, shape index: {2}]
  %6 = xla_tuple %s3, %s4, %s5
  %s7 = sld [smem:[#allocation0]]
  $region61: #{eva_attention.2} parent=0
    _
  %s9 = ssub.s32 1, %s7
  %s10 = scalar_select 0, %s9, %s7
  loop: start=0, step=1, limit=4
  $region2: #{eva_attention.2} parent=0 // loop_pre_header
    _
  $region3: #{eva_attention.2} parent=0 // loop_header
    %s12 = sphi 0, %s16
    %p13 = scmp.ge.s32.totalorder %s12, 4
    %s19 = sphi 0, %s31
    %s20 = sphi 0, %s27
    %s21 = sphi 0, %s19
    %s22 = sphi 0, %s20
    %s23 = sphi 0, %s21
    %s24 = sphi 0, %s22
    %s36 = sphi 0, %s38
    %s39 = sphi 0, %s36
    %s40 = sphi 0, %s39
    %s56 = sphi 0, %s40
    %s60 = sphi 0, %s60
    %s62 = sphi 0, %s60
    %s63 = sphi 0, %s62
    %s77 = sphi 0, %s63
    %s81 = sphi 0, %s81
    %s83 = sphi 0, %s81
    %s84 = sphi 0, %s83
    %s98 = sphi 0, %s84
    %s106 = sphi 0, %s108
    %s109 = sphi 0, %s106
    %s110 = sphi 0, %s109
    %s126 = sphi 0, %s110
    %s134 = sphi 0, %s136
    %s137 = sphi 0, %s134
    %s138 = sphi 0, %s137
    %s154 = sphi 0, %s138
    %s162 = sphi 0, %s164
    %s165 = sphi 0, %s162
    %s166 = sphi 0, %s165
    %s182 = sphi 0, %s166
  $region4: #{eva_attention.2} parent=0 // loop_header_branch
    %15 = sbr.rel (%p13) target = $region8
  $region5: #{eva_attention.2} parent=0 // loop_body
    %s17 = ssub.s32 %s12, 1
    %s18 = ssub.s32 %s12, 2
    %s25 = sadd.s32 1, %s20
    %p26 = scmp.ge.s32.totalorder %s25, 1
    %s27 = scalar_select %p26, 0, %s25
    %s28 = sadd.s32 1, %s19
    %s29 = scalar_select %p26, %s28, %s19
    %p30 = scmp.ge.s32.totalorder %s29, 2
    %s31 = scalar_select %p30, 0, %s29
    %s32 = ssub.s32 %s19, %s31
    %s33 = ssub.s32 %s20, %s27
    %s34 = sor.u32 %s32, %s33
    %p35 = scmp.eq.s32.totalorder %s34, 0
    %s37 = sadd.s32 %s36, 1
    %s38 = scalar_select %p35, %s36, %s37
    %p41 = pneg %p35
    %p42 = scmp.eq.s32.totalorder %s12, 1
    %p43 = por %p41, %p42
    %p44 = scmp.ne.s32.totalorder %s36, %s39
    %p45 = scmp.eq.s32.totalorder %s12, 0
    %p46 = por %p44, %p45
    %p47 = scmp.ne.s32.totalorder %s36, %s39
    %p48 = scmp.eq.s32.totalorder %s17, 1
    %p49 = por %p47, %p48
    %p50 = scmp.ne.s32.totalorder %s39, %s40
    %p51 = scmp.eq.s32.totalorder %s17, 0
    %p52 = por %p50, %p51
    %p53 = scmp.ne.s32.totalorder %s39, %s40
    %p54 = scmp.eq.s32.totalorder %s18, 1
    %p55 = por %p53, %p54
    %p57 = scmp.ne.s32.totalorder %s40, %s56
    %p58 = scmp.eq.s32.totalorder %s18, 0
    %p59 = por %p57, %p58
    %s61 = sadd.s32 %s60, 1
    %p64 = scmp.eq.s32.totalorder %s12, 1
    %p65 = scmp.ne.s32.totalorder %s60, %s62
    %p66 = scmp.eq.s32.totalorder %s12, 0
    %p67 = por %p65, %p66
    %p68 = scmp.ne.s32.totalorder %s60, %s62
    %p69 = scmp.eq.s32.totalorder %s17, 1
    %p70 = por %p68, %p69
    %p71 = scmp.ne.s32.totalorder %s62, %s63
    %p72 = scmp.eq.s32.totalorder %s17, 0
    %p73 = por %p71, %p72
    %p74 = scmp.ne.s32.totalorder %s62, %s63
    %p75 = scmp.eq.s32.totalorder %s18, 1
    %p76 = por %p74, %p75
    %p78 = scmp.ne.s32.totalorder %s63, %s77
    %p79 = scmp.eq.s32.totalorder %s18, 0
    %p80 = por %p78, %p79
    %s82 = sadd.s32 %s81, 1
    %p85 = scmp.eq.s32.totalorder %s12, 1
    %p86 = scmp.ne.s32.totalorder %s81, %s83
    %p87 = scmp.eq.s32.totalorder %s12, 0
    %p88 = por %p86, %p87
    %p89 = scmp.ne.s32.totalorder %s81, %s83
    %p90 = scmp.eq.s32.totalorder %s17, 1
    %p91 = por %p89, %p90
    %p92 = scmp.ne.s32.totalorder %s83, %s84
    %p93 = scmp.eq.s32.totalorder %s17, 0
    %p94 = por %p92, %p93
    %p95 = scmp.ne.s32.totalorder %s83, %s84
    %p96 = scmp.eq.s32.totalorder %s18, 1
    %p97 = por %p95, %p96
    %p99 = scmp.ne.s32.totalorder %s84, %s98
    %p100 = scmp.eq.s32.totalorder %s18, 0
    %p101 = por %p99, %p100
    %s102 = ssub.s32 %s19, %s31
    %s103 = ssub.s32 %s20, %s27
    %s104 = sor.u32 %s102, %s103
    %p105 = scmp.eq.s32.totalorder %s104, 0
    %s107 = sadd.s32 %s106, 1
    %s108 = scalar_select %p105, %s106, %s107
    %p111 = pneg %p105
    %p112 = scmp.eq.s32.totalorder %s12, 1
    %p113 = por %p111, %p112
    %p114 = scmp.ne.s32.totalorder %s106, %s109
    %p115 = scmp.eq.s32.totalorder %s12, 0
    %p116 = por %p114, %p115
    %p117 = scmp.ne.s32.totalorder %s106, %s109
    %p118 = scmp.eq.s32.totalorder %s17, 1
    %p119 = por %p117, %p118
    %p120 = scmp.ne.s32.totalorder %s109, %s110
    %p121 = scmp.eq.s32.totalorder %s17, 0
    %p122 = por %p120, %p121
    %p123 = scmp.ne.s32.totalorder %s109, %s110
    %p124 = scmp.eq.s32.totalorder %s18, 1
    %p125 = por %p123, %p124
    %p127 = scmp.ne.s32.totalorder %s110, %s126
    %p128 = scmp.eq.s32.totalorder %s18, 0
    %p129 = por %p127, %p128
    %s130 = ssub.s32 %s19, %s31
    %s131 = ssub.s32 %s20, %s27
    %s132 = sor.u32 %s130, %s131
    %p133 = scmp.eq.s32.totalorder %s132, 0
    %s135 = sadd.s32 %s134, 1
    %s136 = scalar_select %p133, %s134, %s135
    %p139 = pneg %p133
    %p140 = scmp.eq.s32.totalorder %s12, 1
    %p141 = por %p139, %p140
    %p142 = scmp.ne.s32.totalorder %s134, %s137
    %p143 = scmp.eq.s32.totalorder %s12, 0
    %p144 = por %p142, %p143
    %p145 = scmp.ne.s32.totalorder %s134, %s137
    %p146 = scmp.eq.s32.totalorder %s17, 1
    %p147 = por %p145, %p146
    %p148 = scmp.ne.s32.totalorder %s137, %s138
    %p149 = scmp.eq.s32.totalorder %s17, 0
    %p150 = por %p148, %p149
    %p151 = scmp.ne.s32.totalorder %s137, %s138
    %p152 = scmp.eq.s32.totalorder %s18, 1
    %p153 = por %p151, %p152
    %p155 = scmp.ne.s32.totalorder %s138, %s154
    %p156 = scmp.eq.s32.totalorder %s18, 0
    %p157 = por %p155, %p156
    %s158 = ssub.s32 %s19, %s31
    %s159 = ssub.s32 %s20, %s27
    %s160 = sor.u32 %s158, %s159
    %p161 = scmp.eq.s32.totalorder %s160, 0
    %s163 = sadd.s32 %s162, 1
    %s164 = scalar_select %p161, %s162, %s163
    %p167 = pneg %p161
    %p168 = scmp.eq.s32.totalorder %s12, 1
    %p169 = por %p167, %p168
    %p170 = scmp.ne.s32.totalorder %s162, %s165
    %p171 = scmp.eq.s32.totalorder %s12, 0
    %p172 = por %p170, %p171
    %p173 = scmp.ne.s32.totalorder %s162, %s165
    %p174 = scmp.eq.s32.totalorder %s17, 1
    %p175 = por %p173, %p174
    %p176 = scmp.ne.s32.totalorder %s165, %s166
    %p177 = scmp.eq.s32.totalorder %s17, 0
    %p178 = por %p176, %p177
    %p179 = scmp.ne.s32.totalorder %s165, %s166
    %p180 = scmp.eq.s32.totalorder %s18, 1
    %p181 = por %p179, %p180
    %p183 = scmp.ne.s32.totalorder %s166, %s182
    %p184 = scmp.eq.s32.totalorder %s18, 0
    %p185 = por %p183, %p184
    %p186 = scmp.le.s32.totalorder 1, %s12
    %p187 = scmp.lt.s32.totalorder %s12, 3
    %p188 = pnand %p186, %p187
    %p189 = pneg %p188
    // Predicated region
    $region9: #{eva_attention.2} parent=5 // pred_check
      _
    $region10: #{eva_attention.2} parent=5 // pred_check_branch
      %191 = sbr.rel (%p188) target = $region12
    $region11: #{eva_attention.2} parent=5 // pred_region
      %s192 = ssub.s32 %s12, 1
      // Predicated region
      $region13: #{eva_attention.2} parent=11 // pred_check
        %p193 = pneg %p73
      $region14: #{eva_attention.2} parent=11 // pred_check_branch
        %195 = sbr.rel (%p193) target = $region16
      $region15: #{eva_attention.2} parent=11 // pred_region
        _
      $region16: #{eva_attention.2} parent=11 // pred_fallthru
        _
      // Predicated region
      $region17: #{eva_attention.2} parent=11 // pred_check
        %p196 = pneg %p94
      $region18: #{eva_attention.2} parent=11 // pred_check_branch
        %198 = sbr.rel (%p196) target = $region20
      $region19: #{eva_attention.2} parent=11 // pred_region
        _
      $region20: #{eva_attention.2} parent=11 // pred_fallthru
        _
    $region12: #{eva_attention.2} parent=5 // pred_fallthru
      _
    %p199 = scmp.lt.s32.totalorder %s12, 2
    // Predicated region
    $region21: #{eva_attention.2} parent=5 // pred_check
      %p200 = pneg %p199
    $region22: #{eva_attention.2} parent=5 // pred_check_branch
      %202 = sbr.rel (%p200) target = $region24
    $region23: #{eva_attention.2} parent=5 // pred_region
      // Predicated region
      $region25: #{eva_attention.2} parent=23 // pred_check
        %p203 = pneg %p46
      $region26: #{eva_attention.2} parent=23 // pred_check_branch
        %205 = sbr.rel (%p203) target = $region28
      $region27: #{eva_attention.2} parent=23 // pred_region
        %s206 = smul.u32 2, %s20
        %p207 = scmp.lt.s32.totalorder %s19, 1
        %s208 = scalar_select %p207, %s19, 1
        %p209 = scmp.lt.s32.totalorder %s206, 1
        %s210 = scalar_select %p209, %s206, 1
        %s211 = smul.addr %s208, 2
        %s212 = sadd.s32 %s210, %s211
        %s213 = smul.addr %s212, 4
        %s214 = scalar_lea.vmem %s0, %s213
        %s215 = smul.u32 2, %s20
      $region28: #{eva_attention.2} parent=23 // pred_fallthru
        _
    $region24: #{eva_attention.2} parent=5 // pred_fallthru
      _
    %p216 = scmp.le.s32.totalorder 1, %s12
    %p217 = scmp.lt.s32.totalorder %s12, 3
    %p218 = pnand %p216, %p217
    %p219 = pneg %p218
    // Predicated region
    $region29: #{eva_attention.2} parent=5 // pred_check
      _
    $region30: #{eva_attention.2} parent=5 // pred_check_branch
      %221 = sbr.rel (%p218) target = $region32
    $region31: #{eva_attention.2} parent=5 // pred_region
      %s222 = ssub.s32 %s12, 1
      %s223 = smul.u32 2, %s22
      %p224 = scmp.lt.s32.totalorder %s21, 1
      %s225 = scalar_select %p224, %s21, 1
      %p226 = scmp.lt.s32.totalorder %s223, 1
      %s227 = scalar_select %p226, %s223, 1
      %s228 = smul.addr %s225, 2
      %s229 = sadd.s32 %s227, %s228
      %s230 = smul.addr %s229, 4
      %s231 = scalar_lea.vmem %s0, %s230
      %p232 = pneg %p52
      %p233 = pneg %p49
      %p234 = pneg %p73
      %p235 = pneg %p70
      %p236 = pneg %p94
      %p237 = pneg %p91
      %p238 = pneg %p122
      %p239 = pneg %p119
      %s240 = smul.u32 2, %s22
      %p241 = scmp.lt.s32.totalorder %s21, 1
      %s242 = scalar_select %p241, %s21, 1
      %p243 = scmp.lt.s32.totalorder %s240, 1
      %s244 = scalar_select %p243, %s240, 1
      %s245 = smul.addr %s242, 8
      %s246 = sadd.s32 %s244, %s245
      %s247 = smul.addr %s246, 4
      %s248 = scalar_lea.vmem %s3, %s247
      %p249 = pneg %p150
      %p250 = pneg %p147
      %s251 = smul.u32 2, %s22
      %p252 = scmp.lt.s32.totalorder %s21, 1
      %s253 = scalar_select %p252, %s21, 1
      %p254 = scmp.lt.s32.totalorder %s251, 1
      %s255 = scalar_select %p254, %s251, 1
      %s256 = smul.addr %s253, 8
      %s257 = sadd.s32 %s255, %s256
      %s258 = smul.addr %s257, 4
      %s259 = scalar_lea.vmem %s4, %s258
      %p260 = pneg %p178
      %p261 = pneg %p175
      %s262 = smul.u32 2, %s22
      %p263 = scmp.lt.s32.totalorder %s21, 1
      %s264 = scalar_select %p263, %s21, 1
      %p265 = scmp.lt.s32.totalorder %s262, 1
      %s266 = scalar_select %p265, %s262, 1
      %s267 = smul.addr %s264, 8
      %s268 = sadd.s32 %s266, %s267
      %s269 = smul.addr %s268, 4
      %s270 = scalar_lea.vmem %s5, %s269
      %s271 = smul.u32 2, %s22
      %p272 = scmp.lt.s32.totalorder %s21, 1
      %s273 = scalar_select %p272, %s21, 1
      %p274 = scmp.lt.s32.totalorder %s271, 1
      %s275 = scalar_select %p274, %s271, 1
      %s276 = smul.addr %s273, 2
      %s277 = sadd.s32 %s275, %s276
      %s278 = smul.addr %s277, 4
      %s279 = scalar_lea.vmem %s0, %s278
      %s280 = smul.u32 2, %s22
      %s281 = smul.u32 2, %s22
      %p282 = scmp.lt.s32.totalorder %s21, 1
      %s283 = scalar_select %p282, %s21, 1
      %p284 = scmp.lt.s32.totalorder %s281, 1
      %s285 = scalar_select %p284, %s281, 1
      %s286 = smul.addr %s283, 8
      %s287 = sadd.s32 %s285, %s286
      %s288 = smul.addr %s287, 4
      %s289 = scalar_lea.vmem %s3, %s288
      %s290 = smul.u32 2, %s22
      %s291 = smul.u32 2, %s22
      %p292 = scmp.lt.s32.totalorder %s21, 1
      %s293 = scalar_select %p292, %s21, 1
      %p294 = scmp.lt.s32.totalorder %s291, 1
      %s295 = scalar_select %p294, %s291, 1
      %s296 = smul.addr %s293, 8
      %s297 = sadd.s32 %s295, %s296
      %s298 = smul.addr %s297, 4
      %s299 = scalar_lea.vmem %s4, %s298
      %s300 = smul.u32 2, %s22
      %s301 = smul.u32 2, %s22
      %p302 = scmp.lt.s32.totalorder %s21, 1
      %s303 = scalar_select %p302, %s21, 1
      %p304 = scmp.lt.s32.totalorder %s301, 1
      %s305 = scalar_select %p304, %s301, 1
      %s306 = smul.addr %s303, 8
      %s307 = sadd.s32 %s305, %s306
      %s308 = smul.addr %s307, 4
      %s309 = scalar_lea.vmem %s5, %s308
      %s310 = smul.u32 2, %s22
      %v312 = vld [vmem:[%s279] sm:$0xf]
      %v313 = vld [vmem:[%s279 + $0x4] sm:$0xf]
      %v314 = vld [vmem:[%s1] sm:$0xf]
      %v315 = vld [vmem:[%s1 + $0x4] sm:$0xf]
      %v316 = vld [vmem:[%s1 + $0x8] sm:$0xf]
      %v317 = vld [vmem:[%s1 + $0xc] sm:$0xf]
      %v318 = vld [vmem:[%s2] sm:$0x1]
      %v320 = vlaneseq
      %v321 = vshrl.u32 %v320, 7
      %v322 = vsub.s32 0, %v321
      %v323 = vrot.slane %v318, %v322
      %v327 = vunpack.c.l.b16 %v312
      %v328 = vunpack.c.l.b16 %v313
      %v329 = vpack.c.b16 %v328, %v327
      %v334 = vunpack.c.l.b16 %v314
      %v335 = vunpack.c.l.b16 %v315
      %v336 = vunpack.c.l.b16 %v316
      %v337 = vunpack.c.l.b16 %v317
      %v338 = vpack.c.b16 %v335, %v334
      %v339 = vpack.c.b16 %v337, %v336
      %vm342 = vcmask 261120
      %v344 = vsel %vm342, %v329, 0
      %346 = vmatprep.subr.bf16.mxu0 0
      %347 = vmatpush1.bf16.msra.mxu0 %v338
      %348 = vmatprep.subr.bf16.mxu0 0
      %349 = vmatpush1.bf16.msra.mxu0 %v339
      %350 = vmatprep.subr.bf16.mxu0 0
      %351 = vmatpush1.bf16.msra.mxu0 0
      %352 = vmatprep.subr.bf16.mxu0 0
      %353 = vmatpush1.bf16.msra.mxu0 0
      %354 = vmatprep.subr.bf16.mxu0 0
      %355 = vmatpush1.bf16.msra.mxu0 0
      %356 = vmatprep.subr.bf16.mxu0 0
      %357 = vmatpush1.bf16.msra.mxu0 0
      %358 = vmatprep.subr.bf16.mxu0 0
      %359 = vmatpush1.bf16.msra.mxu0 0
      %360 = vmatprep.subr.bf16.mxu0 0
      %361 = vmatpush1.bf16.msra.mxu0 0
      %362 = vmatprep.subr.bf16.mxu0 0
      %363 = vmatpush1.bf16.msra.mxu0 0
      %364 = vmatprep.subr.bf16.mxu0 0
      %365 = vmatpush1.bf16.msra.mxu0 0
      %366 = vmatprep.subr.bf16.mxu0 0
      %367 = vmatpush1.bf16.msra.mxu0 0
      %368 = vmatprep.subr.bf16.mxu0 0
      %369 = vmatpush1.bf16.msra.mxu0 0
      %370 = vmatprep.subr.bf16.mxu0 0
      %371 = vmatpush1.bf16.msra.mxu0 0
      %372 = vmatprep.subr.bf16.mxu0 0
      %373 = vmatpush1.bf16.msra.mxu0 0
      %374 = vmatprep.subr.bf16.mxu0 0
      %375 = vmatpush1.bf16.msra.mxu0 0
      %376 = vmatprep.subr.bf16.mxu0 0
      %377 = vmatpush1.bf16.msra.mxu0 0
      %378 = vmatprep.mubr.bf16.mxu0 0
      %379 = vmatmul.mubr.bf16.gmra.mrb[0].mxu0 %v344
      %v380 = vpop.f32.mrb[0].mxu0
      %v381 = vadd.f32 %v323, %v380
      %v382 = vpop.f32.mrb[0].mxu0
      %v383 = vpop.f32.mrb[0].mxu0
      %v384 = vadd.f32 %v323, %v383
      %v385 = vpop.f32.mrb[0].mxu0
      %386 = vdwg.mxu0
      %v387 = vpack.c.bf16 %v384, %v381
      %v389 = vunpack.c.l.b16 %v387
      %v390 = vunpack.c.h.b16 %v387
      %v391 = vpack.c.b16 %v389, %v389
      %v392 = vpack.c.b16 %v390, %v390
      %vm395 = vcmask 60416
      %396 = vst.msk [vmem:[%s289] sm:$0xf] %vm395, %v391
      %397 = vst.msk [vmem:[%s289 + $0x4] sm:$0xf] %vm395, %v392
      %398 = vrot.lane.b32.xlu0 %v391, 120
      %v399 = vpop.permute.xlu0 %398
      %400 = vrot.lane.b32.xlu0 %v392, 120
      %v401 = vpop.permute.xlu0 %400
      %s404 = scalar_lea.vmem %s289, 8
      %405 = vst.msk [vmem:[%s404] sm:$0xf] %vm395, %v399
      %406 = vst.msk [vmem:[%s404 + $0x4] sm:$0xf] %vm395, %v401
      %407 = vrot.lane.b32.xlu0 %v391, 112
      %v408 = vpop.permute.xlu0 %407
      %409 = vrot.lane.b32.xlu0 %v392, 112
      %v410 = vpop.permute.xlu0 %409
      %s413 = scalar_lea.vmem %s289, 16
      %414 = vst.msk [vmem:[%s413] sm:$0xf] %vm395, %v408
      %415 = vst.msk [vmem:[%s413 + $0x4] sm:$0xf] %vm395, %v410
      %416 = vrot.lane.b32.xlu0 %v391, 104
      %v417 = vpop.permute.xlu0 %416
      %418 = vrot.lane.b32.xlu0 %v392, 104
      %v419 = vpop.permute.xlu0 %418
      %s422 = scalar_lea.vmem %s289, 24
      %423 = vst.msk [vmem:[%s422] sm:$0xf] %vm395, %v417
      %424 = vst.msk [vmem:[%s422 + $0x4] sm:$0xf] %vm395, %v419
      %425 = vrot.lane.b32.xlu0 %v391, 96
      %v426 = vpop.permute.xlu0 %425
      %427 = vrot.lane.b32.xlu0 %v392, 96
      %v428 = vpop.permute.xlu0 %427
      %431 = vst.msk [vmem:[%s299] sm:$0xf] %vm395, %v426
      %432 = vst.msk [vmem:[%s299 + $0x4] sm:$0xf] %vm395, %v428
      %433 = vrot.lane.b32.xlu0 %v391, 88
      %v434 = vpop.permute.xlu0 %433
      %435 = vrot.lane.b32.xlu0 %v392, 88
      %v436 = vpop.permute.xlu0 %435
      %s439 = scalar_lea.vmem %s299, 8
      %440 = vst.msk [vmem:[%s439] sm:$0xf] %vm395, %v434
      %441 = vst.msk [vmem:[%s439 + $0x4] sm:$0xf] %vm395, %v436
      %442 = vrot.lane.b32.xlu0 %v391, 80
      %v443 = vpop.permute.xlu0 %442
      %444 = vrot.lane.b32.xlu0 %v392, 80
      %v445 = vpop.permute.xlu0 %444
      %s448 = scalar_lea.vmem %s299, 16
      %449 = vst.msk [vmem:[%s448] sm:$0xf] %vm395, %v443
      %450 = vst.msk [vmem:[%s448 + $0x4] sm:$0xf] %vm395, %v445
      %451 = vrot.lane.b32.xlu0 %v391, 72
      %v452 = vpop.permute.xlu0 %451
      %453 = vrot.lane.b32.xlu0 %v392, 72
      %v454 = vpop.permute.xlu0 %453
      %s457 = scalar_lea.vmem %s299, 24
      %458 = vst.msk [vmem:[%s457] sm:$0xf] %vm395, %v452
      %459 = vst.msk [vmem:[%s457 + $0x4] sm:$0xf] %vm395, %v454
      %460 = vrot.lane.b32.xlu0 %v391, 64
      %v461 = vpop.permute.xlu0 %460
      %462 = vrot.lane.b32.xlu0 %v392, 64
      %v463 = vpop.permute.xlu0 %462
      %466 = vst.msk [vmem:[%s309] sm:$0xf] %vm395, %v461
      %467 = vst.msk [vmem:[%s309 + $0x4] sm:$0xf] %vm395, %v463
      %468 = vrot.lane.b32.xlu0 %v391, 56
      %v469 = vpop.permute.xlu0 %468
      %470 = vrot.lane.b32.xlu0 %v392, 56
      %v471 = vpop.permute.xlu0 %470
      %s474 = scalar_lea.vmem %s309, 8
      %475 = vst.msk [vmem:[%s474] sm:$0xf] %vm395, %v469
      %476 = vst.msk [vmem:[%s474 + $0x4] sm:$0xf] %vm395, %v471
      %477 = vrot.lane.b32.xlu0 %v391, 48
      %v478 = vpop.permute.xlu0 %477
      %479 = vrot.lane.b32.xlu0 %v392, 48
      %v480 = vpop.permute.xlu0 %479
      %s483 = scalar_lea.vmem %s309, 16
      %484 = vst.msk [vmem:[%s483] sm:$0xf] %vm395, %v478
      %485 = vst.msk [vmem:[%s483 + $0x4] sm:$0xf] %vm395, %v480
      %486 = vrot.lane.b32.xlu0 %v391, 40
      %v487 = vpop.permute.xlu0 %486
      %488 = vrot.lane.b32.xlu0 %v392, 40
      %v489 = vpop.permute.xlu0 %488
      %s492 = scalar_lea.vmem %s309, 24
      %493 = vst.msk [vmem:[%s492] sm:$0xf] %vm395, %v487
      %494 = vst.msk [vmem:[%s492 + $0x4] sm:$0xf] %vm395, %v489
      %s495 = smul.u32 2, %s22
      %p496 = scmp.lt.s32.totalorder %s21, 1
      %s497 = scalar_select %p496, %s21, 1
      %p498 = scmp.lt.s32.totalorder %s495, 1
      %s499 = scalar_select %p498, %s495, 1
      %s500 = smul.addr %s497, 8
      %s501 = sadd.s32 %s499, %s500
      %s502 = smul.addr %s501, 4
      %s503 = scalar_lea.vmem %s3, %s502
      %s504 = smul.u32 2, %s22
      %p505 = scmp.lt.s32.totalorder %s21, 1
      %s506 = scalar_select %p505, %s21, 1
      %p507 = scmp.lt.s32.totalorder %s504, 1
      %s508 = scalar_select %p507, %s504, 1
      %s509 = smul.addr %s506, 8
      %s510 = sadd.s32 %s508, %s509
      %s511 = smul.addr %s510, 4
      %s512 = scalar_lea.vmem %s4, %s511
      %s513 = smul.u32 2, %s22
      %p514 = scmp.lt.s32.totalorder %s21, 1
      %s515 = scalar_select %p514, %s21, 1
      %p516 = scmp.lt.s32.totalorder %s513, 1
      %s517 = scalar_select %p516, %s513, 1
      %s518 = smul.addr %s515, 8
      %s519 = sadd.s32 %s517, %s518
      %s520 = smul.addr %s519, 4
      %s521 = scalar_lea.vmem %s5, %s520
      // Predicated region
      $region33: #{eva_attention.2} parent=31 // pred_check
        %p522 = pneg %p119
      $region34: #{eva_attention.2} parent=31 // pred_check_branch
        %524 = sbr.rel (%p522) target = $region36
      $region35: #{eva_attention.2} parent=31 // pred_region
        %s525 = smul.u32 2, %s22
      $region36: #{eva_attention.2} parent=31 // pred_fallthru
        _
      // Predicated region
      $region37: #{eva_attention.2} parent=31 // pred_check
        %p526 = pneg %p147
      $region38: #{eva_attention.2} parent=31 // pred_check_branch
        %528 = sbr.rel (%p526) target = $region40
      $region39: #{eva_attention.2} parent=31 // pred_region
        %s529 = smul.u32 2, %s22
      $region40: #{eva_attention.2} parent=31 // pred_fallthru
        _
      // Predicated region
      $region41: #{eva_attention.2} parent=31 // pred_check
        %p530 = pneg %p175
      $region42: #{eva_attention.2} parent=31 // pred_check_branch
        %532 = sbr.rel (%p530) target = $region44
      $region43: #{eva_attention.2} parent=31 // pred_region
        %s533 = smul.u32 2, %s22
      $region44: #{eva_attention.2} parent=31 // pred_fallthru
        _
    $region32: #{eva_attention.2} parent=5 // pred_fallthru
      _
    %p534 = scmp.le.s32.totalorder 2, %s12
    // Predicated region
    $region45: #{eva_attention.2} parent=5 // pred_check
      %p535 = pneg %p534
    $region46: #{eva_attention.2} parent=5 // pred_check_branch
      %537 = sbr.rel (%p535) target = $region48
    $region47: #{eva_attention.2} parent=5 // pred_region
      %s538 = ssub.s32 %s12, 2
      // Predicated region
      $region49: #{eva_attention.2} parent=47 // pred_check
        %p539 = pneg %p125
      $region50: #{eva_attention.2} parent=47 // pred_check_branch
        %541 = sbr.rel (%p539) target = $region52
      $region51: #{eva_attention.2} parent=47 // pred_region
        %s542 = smul.u32 2, %s24
        %p543 = scmp.lt.s32.totalorder %s23, 1
        %s544 = scalar_select %p543, %s23, 1
        %p545 = scmp.lt.s32.totalorder %s542, 1
        %s546 = scalar_select %p545, %s542, 1
        %s547 = smul.addr %s544, 8
        %s548 = sadd.s32 %s546, %s547
        %s549 = smul.addr %s548, 4
        %s550 = scalar_lea.vmem %s3, %s549
      $region52: #{eva_attention.2} parent=47 // pred_fallthru
        _
      // Predicated region
      $region53: #{eva_attention.2} parent=47 // pred_check
        %p551 = pneg %p153
      $region54: #{eva_attention.2} parent=47 // pred_check_branch
        %553 = sbr.rel (%p551) target = $region56
      $region55: #{eva_attention.2} parent=47 // pred_region
        %s554 = smul.u32 2, %s24
        %p555 = scmp.lt.s32.totalorder %s23, 1
        %s556 = scalar_select %p555, %s23, 1
        %p557 = scmp.lt.s32.totalorder %s554, 1
        %s558 = scalar_select %p557, %s554, 1
        %s559 = smul.addr %s556, 8
        %s560 = sadd.s32 %s558, %s559
        %s561 = smul.addr %s560, 4
        %s562 = scalar_lea.vmem %s4, %s561
      $region56: #{eva_attention.2} parent=47 // pred_fallthru
        _
      // Predicated region
      $region57: #{eva_attention.2} parent=47 // pred_check
        %p563 = pneg %p181
      $region58: #{eva_attention.2} parent=47 // pred_check_branch
        %565 = sbr.rel (%p563) target = $region60
      $region59: #{eva_attention.2} parent=47 // pred_region
        %s566 = smul.u32 2, %s24
        %p567 = scmp.lt.s32.totalorder %s23, 1
        %s568 = scalar_select %p567, %s23, 1
        %p569 = scmp.lt.s32.totalorder %s566, 1
        %s570 = scalar_select %p569, %s566, 1
        %s571 = smul.addr %s568, 8
        %s572 = sadd.s32 %s570, %s571
        %s573 = smul.addr %s572, 4
        %s574 = scalar_lea.vmem %s5, %s573
      $region60: #{eva_attention.2} parent=47 // pred_fallthru
        _
    $region48: #{eva_attention.2} parent=5 // pred_fallthru
      _
  $region6: #{eva_attention.2} parent=0 // loop_footer
    %s16 = sadd.s32 1, %s12
  $region7: #{eva_attention.2} parent=0 // loop_footer_branch
    %11 = sbr.rel target = $region3
  $region8: #{eva_attention.2} parent=0 // loop_exit
    _

// kernel: eva_attention.3
$region0: #{eva_attention.3}
  #allocation0 [shape = 'u32[]', space=smem, size = 0x4, offset = 0x4, fixed_abs, tag = 'smem constant byte address 0x4 - core index']
  #allocation1 [shape = 'u32[144,128]{1,0:T(1,128)}', space=vmem, size = 0x12000, scoped, tag = 'internal scratch']
  #allocation2 [shape = 'f32[4,16,1]{2,1,0:T(8,128)}', space=vmem, size = 0x8000, scoped, tag = 'scratch operand']
  #allocation3 [shape = 'f32[4,16,1]{2,1,0:T(8,128)}', space=vmem, size = 0x8000, scoped, tag = 'scratch operand']
  #allocation4 [shape = 'f32[4,16,8]{2,1,0:T(8,128)}', space=vmem, size = 0x8000, scoped, tag = 'scratch operand']
  #allocation5 [shape = 'f32[16,32]{1,0:T(8,128)}', space=vmem, size = 0x2000, scoped, tag = 'scratch operand']
  %s0 = inlined_call_operand.vmem [shape: bf16[2,4,16,8], index: 0, kind: input, shape index: {}]
  %s1 = inlined_call_operand.vmem [shape: bf16[2,4,16,8], index: 1, kind: input, shape index: {}]
  %s2 = inlined_call_operand.vmem [shape: bf16[2,4,16,8], index: 2, kind: input, shape index: {}]
  %s3 = inlined_call_operand.vmem [shape: bf16[32,32], index: 3, kind: input, shape index: {}]
  %s4 = inlined_call_operand.vmem [shape: f32[1,32], index: 4, kind: input, shape index: {}]
  %s5 = inlined_call_operand.hbm [shape: f32[2,16,32], index: 5, kind: output, shape index: {}]
  %s6 = sld [smem:[#allocation0]]
  $region61: #{eva_attention.3} parent=0
    _
  %s8 = ssub.s32 1, %s6
  %s9 = scalar_select 0, %s8, %s6
  $region1: #{eva_attention.3} parent=0
    #allocation6 [shape = 'u8[16384]{0}', space=vmem, size = 0x4000, scoped, tag = 'output window, operand 0']
    #allocation7 [shape = 's32[2]{0}', space=sflag, size = 0x8, scoped, tag = 'scoped memory for eva_attention.3']
    %10 = vsyncpa [#allocation7], 0
    %s11 = scalar_lea.sflag [#allocation7], 1
    %12 = vsyncpa %s11, 0
    loop: start=0, step=1, limit=4
    $region2: #{eva_attention.3} parent=1 // loop_pre_header
      _
    $region3: #{eva_attention.3} parent=1 // loop_header
      %s14 = sphi 0, %s18
      %p15 = scmp.ge.s32.totalorder %s14, 4
      %s21 = sphi 0, %s40
      %s22 = sphi 0, %s36
      %s23 = sphi 0, %s32
      %s24 = sphi 0, %s21
      %s25 = sphi 0, %s22
      %s26 = sphi 0, %s23
      %s27 = sphi 0, %s24
      %s28 = sphi 0, %s25
      %s29 = sphi 0, %s26
      %s45 = sphi 0, %s47
      %s48 = sphi 0, %s45
      %s49 = sphi 0, %s48
      %s65 = sphi 0, %s49
      %s73 = sphi 0, %s75
      %s76 = sphi 0, %s73
      %s77 = sphi 0, %s76
      %s93 = sphi 0, %s77
      %s101 = sphi 0, %s103
      %s104 = sphi 0, %s101
      %s105 = sphi 0, %s104
      %s121 = sphi 0, %s105
      %s125 = sphi 0, %s125
      %s127 = sphi 0, %s125
      %s128 = sphi 0, %s127
      %s142 = sphi 0, %s128
      %s146 = sphi 0, %s146
      %s148 = sphi 0, %s146
      %s149 = sphi 0, %s148
      %s163 = sphi 0, %s149
      %s171 = sphi 0, %s173
      %s174 = sphi 0, %s171
      %s175 = sphi 0, %s174
      %s191 = sphi 0, %s175
    $region4: #{eva_attention.3} parent=1 // loop_header_branch
      %17 = sbr.rel (%p15) target = $region8
    $region5: #{eva_attention.3} parent=1 // loop_body
      %s19 = ssub.s32 %s14, 1
      %s20 = ssub.s32 %s14, 2
      %s30 = sadd.s32 1, %s23
      %p31 = scmp.ge.s32.totalorder %s30, 1
      %s32 = scalar_select %p31, 0, %s30
      %s33 = sadd.s32 1, %s22
      %s34 = scalar_select %p31, %s33, %s22
      %p35 = scmp.ge.s32.totalorder %s34, 1
      %s36 = scalar_select %p35, 0, %s34
      %s37 = sadd.s32 1, %s21
      %s38 = scalar_select %p35, %s37, %s21
      %p39 = scmp.ge.s32.totalorder %s38, 2
      %s40 = scalar_select %p39, 0, %s38
      %s41 = ssub.s32 %s21, %s40
      %s42 = ssub.s32 %s22, %s36
      %s43 = sor.u32 %s41, %s42
      %p44 = scmp.eq.s32.totalorder %s43, 0
      %s46 = sadd.s32 %s45, 1
      %s47 = scalar_select %p44, %s45, %s46
      %p50 = pneg %p44
      %p51 = scmp.eq.s32.totalorder %s14, 1
      %p52 = por %p50, %p51
      %p53 = scmp.ne.s32.totalorder %s45, %s48
      %p54 = scmp.eq.s32.totalorder %s14, 0
      %p55 = por %p53, %p54
      %p56 = scmp.ne.s32.totalorder %s45, %s48
      %p57 = scmp.eq.s32.totalorder %s19, 1
      %p58 = por %p56, %p57
      %p59 = scmp.ne.s32.totalorder %s48, %s49
      %p60 = scmp.eq.s32.totalorder %s19, 0
      %p61 = por %p59, %p60
      %p62 = scmp.ne.s32.totalorder %s48, %s49
      %p63 = scmp.eq.s32.totalorder %s20, 1
      %p64 = por %p62, %p63
      %p66 = scmp.ne.s32.totalorder %s49, %s65
      %p67 = scmp.eq.s32.totalorder %s20, 0
      %p68 = por %p66, %p67
      %s69 = ssub.s32 %s21, %s40
      %s70 = ssub.s32 %s23, %s32
      %s71 = sor.u32 %s69, %s70
      %p72 = scmp.eq.s32.totalorder %s71, 0
      %s74 = sadd.s32 %s73, 1
      %s75 = scalar_select %p72, %s73, %s74
      %p78 = pneg %p72
      %p79 = scmp.eq.s32.totalorder %s14, 1
      %p80 = por %p78, %p79
      %p81 = scmp.ne.s32.totalorder %s73, %s76
      %p82 = scmp.eq.s32.totalorder %s14, 0
      %p83 = por %p81, %p82
      %p84 = scmp.ne.s32.totalorder %s73, %s76
      %p85 = scmp.eq.s32.totalorder %s19, 1
      %p86 = por %p84, %p85
      %p87 = scmp.ne.s32.totalorder %s76, %s77
      %p88 = scmp.eq.s32.totalorder %s19, 0
      %p89 = por %p87, %p88
      %p90 = scmp.ne.s32.totalorder %s76, %s77
      %p91 = scmp.eq.s32.totalorder %s20, 1
      %p92 = por %p90, %p91
      %p94 = scmp.ne.s32.totalorder %s77, %s93
      %p95 = scmp.eq.s32.totalorder %s20, 0
      %p96 = por %p94, %p95
      %s97 = ssub.s32 %s21, %s40
      %s98 = ssub.s32 %s23, %s32
      %s99 = sor.u32 %s97, %s98
      %p100 = scmp.eq.s32.totalorder %s99, 0
      %s102 = sadd.s32 %s101, 1
      %s103 = scalar_select %p100, %s101, %s102
      %p106 = pneg %p100
      %p107 = scmp.eq.s32.totalorder %s14, 1
      %p108 = por %p106, %p107
      %p109 = scmp.ne.s32.totalorder %s101, %s104
      %p110 = scmp.eq.s32.totalorder %s14, 0
      %p111 = por %p109, %p110
      %p112 = scmp.ne.s32.totalorder %s101, %s104
      %p113 = scmp.eq.s32.totalorder %s19, 1
      %p114 = por %p112, %p113
      %p115 = scmp.ne.s32.totalorder %s104, %s105
      %p116 = scmp.eq.s32.totalorder %s19, 0
      %p117 = por %p115, %p116
      %p118 = scmp.ne.s32.totalorder %s104, %s105
      %p119 = scmp.eq.s32.totalorder %s20, 1
      %p120 = por %p118, %p119
      %p122 = scmp.ne.s32.totalorder %s105, %s121
      %p123 = scmp.eq.s32.totalorder %s20, 0
      %p124 = por %p122, %p123
      %s126 = sadd.s32 %s125, 1
      %p129 = scmp.eq.s32.totalorder %s14, 1
      %p130 = scmp.ne.s32.totalorder %s125, %s127
      %p131 = scmp.eq.s32.totalorder %s14, 0
      %p132 = por %p130, %p131
      %p133 = scmp.ne.s32.totalorder %s125, %s127
      %p134 = scmp.eq.s32.totalorder %s19, 1
      %p135 = por %p133, %p134
      %p136 = scmp.ne.s32.totalorder %s127, %s128
      %p137 = scmp.eq.s32.totalorder %s19, 0
      %p138 = por %p136, %p137
      %p139 = scmp.ne.s32.totalorder %s127, %s128
      %p140 = scmp.eq.s32.totalorder %s20, 1
      %p141 = por %p139, %p140
      %p143 = scmp.ne.s32.totalorder %s128, %s142
      %p144 = scmp.eq.s32.totalorder %s20, 0
      %p145 = por %p143, %p144
      %s147 = sadd.s32 %s146, 1
      %p150 = scmp.eq.s32.totalorder %s14, 1
      %p151 = scmp.ne.s32.totalorder %s146, %s148
      %p152 = scmp.eq.s32.totalorder %s14, 0
      %p153 = por %p151, %p152
      %p154 = scmp.ne.s32.totalorder %s146, %s148
      %p155 = scmp.eq.s32.totalorder %s19, 1
      %p156 = por %p154, %p155
      %p157 = scmp.ne.s32.totalorder %s148, %s149
      %p158 = scmp.eq.s32.totalorder %s19, 0
      %p159 = por %p157, %p158
      %p160 = scmp.ne.s32.totalorder %s148, %s149
      %p161 = scmp.eq.s32.totalorder %s20, 1
      %p162 = por %p160, %p161
      %p164 = scmp.ne.s32.totalorder %s149, %s163
      %p165 = scmp.eq.s32.totalorder %s20, 0
      %p166 = por %p164, %p165
      %s167 = ssub.s32 %s21, %s40
      %s168 = ssub.s32 %s22, %s36
      %s169 = sor.u32 %s167, %s168
      %p170 = scmp.eq.s32.totalorder %s169, 0
      %s172 = sadd.s32 %s171, 1
      %s173 = scalar_select %p170, %s171, %s172
      %p176 = pneg %p170
      %p177 = scmp.eq.s32.totalorder %s14, 1
      %p178 = por %p176, %p177
      %p179 = scmp.ne.s32.totalorder %s171, %s174
      %p180 = scmp.eq.s32.totalorder %s14, 0
      %p181 = por %p179, %p180
      %p182 = scmp.ne.s32.totalorder %s171, %s174
      %p183 = scmp.eq.s32.totalorder %s19, 1
      %p184 = por %p182, %p183
      %p185 = scmp.ne.s32.totalorder %s174, %s175
      %p186 = scmp.eq.s32.totalorder %s19, 0
      %p187 = por %p185, %p186
      %p188 = scmp.ne.s32.totalorder %s174, %s175
      %p189 = scmp.eq.s32.totalorder %s20, 1
      %p190 = por %p188, %p189
      %p192 = scmp.ne.s32.totalorder %s175, %s191
      %p193 = scmp.eq.s32.totalorder %s20, 0
      %p194 = por %p192, %p193
      %p195 = scmp.le.s32.totalorder 1, %s14
      %p196 = scmp.lt.s32.totalorder %s14, 3
      %p197 = pnand %p195, %p196
      %p198 = pneg %p197
      // Predicated region
      $region9: #{eva_attention.3} parent=5 // pred_check
        _
      $region10: #{eva_attention.3} parent=5 // pred_check_branch
        %200 = sbr.rel (%p197) target = $region12
      $region11: #{eva_attention.3} parent=5 // pred_region
        %s201 = ssub.s32 %s14, 1
        // Predicated region
        $region13: #{eva_attention.3} parent=11 // pred_check
          %p202 = pneg %p138
        $region14: #{eva_attention.3} parent=11 // pred_check_branch
          %204 = sbr.rel (%p202) target = $region16
        $region15: #{eva_attention.3} parent=11 // pred_region
          _
        $region16: #{eva_attention.3} parent=11 // pred_fallthru
          _
        // Predicated region
        $region17: #{eva_attention.3} parent=11 // pred_check
          %p205 = pneg %p159
        $region18: #{eva_attention.3} parent=11 // pred_check_branch
          %207 = sbr.rel (%p205) target = $region20
        $region19: #{eva_attention.3} parent=11 // pred_region
          _
        $region20: #{eva_attention.3} parent=11 // pred_fallthru
          _
      $region12: #{eva_attention.3} parent=5 // pred_fallthru
        _
      %p208 = scmp.lt.s32.totalorder %s14, 2
      // Predicated region
      $region21: #{eva_attention.3} parent=5 // pred_check
        %p209 = pneg %p208
      $region22: #{eva_attention.3} parent=5 // pred_check_branch
        %211 = sbr.rel (%p209) target = $region24
      $region23: #{eva_attention.3} parent=5 // pred_region
        // Predicated region
        $region25: #{eva_attention.3} parent=23 // pred_check
          %p212 = pneg %p55
        $region26: #{eva_attention.3} parent=23 // pred_check_branch
          %214 = sbr.rel (%p212) target = $region28
        $region27: #{eva_attention.3} parent=23 // pred_region
          %s215 = smul.u32 2, %s22
          %p216 = scmp.lt.s32.totalorder %s21, 1
          %s217 = scalar_select %p216, %s21, 1
          %p218 = scmp.lt.s32.totalorder %s215, 1
          %s219 = scalar_select %p218, %s215, 1
          %s220 = smul.addr %s217, 8
          %s221 = sadd.s32 %s219, %s220
          %s222 = smul.addr %s221, 4
          %s223 = scalar_lea.vmem %s0, %s222
          %s224 = smul.u32 2, %s22
        $region28: #{eva_attention.3} parent=23 // pred_fallthru
          _
        // Predicated region
        $region29: #{eva_attention.3} parent=23 // pred_check
          %p225 = pneg %p83
        $region30: #{eva_attention.3} parent=23 // pred_check_branch
          %227 = sbr.rel (%p225) target = $region32
        $region31: #{eva_attention.3} parent=23 // pred_region
          %s228 = smul.u32 2, %s23
          %p229 = scmp.lt.s32.totalorder %s21, 1
          %s230 = scalar_select %p229, %s21, 1
          %p231 = scmp.lt.s32.totalorder %s228, 1
          %s232 = scalar_select %p231, %s228, 1
          %s233 = smul.addr %s230, 8
          %s234 = sadd.s32 %s232, %s233
          %s235 = smul.addr %s234, 4
          %s236 = scalar_lea.vmem %s1, %s235
          %s237 = smul.u32 2, %s23
        $region32: #{eva_attention.3} parent=23 // pred_fallthru
          _
        // Predicated region
        $region33: #{eva_attention.3} parent=23 // pred_check
          %p238 = pneg %p111
        $region34: #{eva_attention.3} parent=23 // pred_check_branch
          %240 = sbr.rel (%p238) target = $region36
        $region35: #{eva_attention.3} parent=23 // pred_region
          %s241 = smul.u32 2, %s23
          %p242 = scmp.lt.s32.totalorder %s21, 1
          %s243 = scalar_select %p242, %s21, 1
          %p244 = scmp.lt.s32.totalorder %s241, 1
          %s245 = scalar_select %p244, %s241, 1
          %s246 = smul.addr %s243, 8
          %s247 = sadd.s32 %s245, %s246
          %s248 = smul.addr %s247, 4
          %s249 = scalar_lea.vmem %s2, %s248
          %s250 = smul.u32 2, %s23
        $region36: #{eva_attention.3} parent=23 // pred_fallthru
          _
      $region24: #{eva_attention.3} parent=5 // pred_fallthru
        _
      %p251 = scmp.le.s32.totalorder 1, %s14
      %p252 = scmp.lt.s32.totalorder %s14, 3
      %p253 = pnand %p251, %p252
      %p254 = pneg %p253
      // Predicated region
      $region37: #{eva_attention.3} parent=5 // pred_check
        _
      $region38: #{eva_attention.3} parent=5 // pred_check_branch
        %256 = sbr.rel (%p253) target = $region40
      $region39: #{eva_attention.3} parent=5 // pred_region
        %s257 = ssub.s32 %s14, 1
        %s258 = smul.u32 2, %s25
        %p259 = scmp.lt.s32.totalorder %s24, 1
        %s260 = scalar_select %p259, %s24, 1
        %p261 = scmp.lt.s32.totalorder %s258, 1
        %s262 = scalar_select %p261, %s258, 1
        %s263 = smul.addr %s260, 8
        %s264 = sadd.s32 %s262, %s263
        %s265 = smul.addr %s264, 4
        %s266 = scalar_lea.vmem %s0, %s265
        %p267 = pneg %p61
        %p268 = pneg %p58
        %s269 = smul.u32 2, %s26
        %p270 = scmp.lt.s32.totalorder %s24, 1
        %s271 = scalar_select %p270, %s24, 1
        %p272 = scmp.lt.s32.totalorder %s269, 1
        %s273 = scalar_select %p272, %s269, 1
        %s274 = smul.addr %s271, 8
        %s275 = sadd.s32 %s273, %s274
        %s276 = smul.addr %s275, 4
        %s277 = scalar_lea.vmem %s1, %s276
        %p278 = pneg %p89
        %p279 = pneg %p86
        %s280 = smul.u32 2, %s26
        %p281 = scmp.lt.s32.totalorder %s24, 1
        %s282 = scalar_select %p281, %s24, 1
        %p283 = scmp.lt.s32.totalorder %s280, 1
        %s284 = scalar_select %p283, %s280, 1
        %s285 = smul.addr %s282, 8
        %s286 = sadd.s32 %s284, %s285
        %s287 = smul.addr %s286, 4
        %s288 = scalar_lea.vmem %s2, %s287
        %p289 = pneg %p117
        %p290 = pneg %p114
        %p291 = pneg %p138
        %p292 = pneg %p135
        %p293 = pneg %p159
        %p294 = pneg %p156
        %p295 = pneg %p187
        %p296 = pneg %p184
        %s297 = sand.u32 %s174, 1
        %s298 = scalar_lea.sflag [#allocation7], %s297
        %s299 = sand.u32 %s174, 1
        %s300 = smul.addr %s299, 16
        %s301 = scalar_lea.vmem [#allocation6], %s300
        %s302 = smul.u32 2, %s25
        %p303 = scmp.lt.s32.totalorder %s24, 1
        %s304 = scalar_select %p303, %s24, 1
        %p305 = scmp.lt.s32.totalorder %s302, 1
        %s306 = scalar_select %p305, %s302, 1
        %s307 = smul.addr %s304, 8
        %s308 = sadd.s32 %s306, %s307
        %s309 = smul.addr %s308, 4
        %s310 = scalar_lea.vmem %s0, %s309
        %s311 = smul.u32 2, %s25
        %s312 = smul.u32 2, %s26
        %p313 = scmp.lt.s32.totalorder %s24, 1
        %s314 = scalar_select %p313, %s24, 1
        %p315 = scmp.lt.s32.totalorder %s312, 1
        %s316 = scalar_select %p315, %s312, 1
        %s317 = smul.addr %s314, 8
        %s318 = sadd.s32 %s316, %s317
        %s319 = smul.addr %s318, 4
        %s320 = scalar_lea.vmem %s1, %s319
        %s321 = smul.u32 2, %s26
        %s322 = smul.u32 2, %s26
        %p323 = scmp.lt.s32.totalorder %s24, 1
        %s324 = scalar_select %p323, %s24, 1
        %p325 = scmp.lt.s32.totalorder %s322, 1
        %s326 = scalar_select %p325, %s322, 1
        %s327 = smul.addr %s324, 8
        %s328 = sadd.s32 %s326, %s327
        %s329 = smul.addr %s328, 4
        %s330 = scalar_lea.vmem %s2, %s329
        %s331 = smul.u32 2, %s26
        %s332 = smul.u32 2, %s25
        %p334 = scmp.eq.s32.totalorder %s26, 0
        // Predicated region
        $region41: #{eva_attention.3} parent=39 // pred_check
          %p335 = pneg %p334
        $region42: #{eva_attention.3} parent=39 // pred_check_branch
          %337 = sbr.rel (%p335) target = $region44
        $region43: #{eva_attention.3} parent=39 // pred_region
          %vm338 = vcmask 7168
          %339 = vst.msk [vmem:[#allocation2] sm:$0xff] %vm338, -inf
          %340 = vst.msk [vmem:[#allocation2 + $0x8] sm:$0xff] %vm338, -inf
          %341 = vst.msk [vmem:[#allocation2 + $0x10] sm:$0xff] %vm338, -inf
          %342 = vst.msk [vmem:[#allocation2 + $0x18] sm:$0xff] %vm338, -inf
          %343 = vst.msk [vmem:[#allocation2 + $0x20] sm:$0xff] %vm338, -inf
          %344 = vst.msk [vmem:[#allocation2 + $0x28] sm:$0xff] %vm338, -inf
          %345 = vst.msk [vmem:[#allocation2 + $0x30] sm:$0xff] %vm338, -inf
          %346 = vst.msk [vmem:[#allocation2 + $0x38] sm:$0xff] %vm338, -inf
          %347 = vst.msk [vmem:[#allocation3] sm:$0xff] %vm338, 0.0
          %348 = vst.msk [vmem:[#allocation3 + $0x8] sm:$0xff] %vm338, 0.0
          %349 = vst.msk [vmem:[#allocation3 + $0x10] sm:$0xff] %vm338, 0.0
          %350 = vst.msk [vmem:[#allocation3 + $0x18] sm:$0xff] %vm338, 0.0
          %351 = vst.msk [vmem:[#allocation3 + $0x20] sm:$0xff] %vm338, 0.0
          %352 = vst.msk [vmem:[#allocation3 + $0x28] sm:$0xff] %vm338, 0.0
          %353 = vst.msk [vmem:[#allocation3 + $0x30] sm:$0xff] %vm338, 0.0
          %354 = vst.msk [vmem:[#allocation3 + $0x38] sm:$0xff] %vm338, 0.0
          %vm355 = vcmask 64512
          %356 = vst.msk [vmem:[#allocation4] sm:$0xff] %vm355, 0.0
          %357 = vst.msk [vmem:[#allocation4 + $0x8] sm:$0xff] %vm355, 0.0
          %358 = vst.msk [vmem:[#allocation4 + $0x10] sm:$0xff] %vm355, 0.0
          %359 = vst.msk [vmem:[#allocation4 + $0x18] sm:$0xff] %vm355, 0.0
          %360 = vst.msk [vmem:[#allocation4 + $0x20] sm:$0xff] %vm355, 0.0
          %361 = vst.msk [vmem:[#allocation4 + $0x28] sm:$0xff] %vm355, 0.0
          %362 = vst.msk [vmem:[#allocation4 + $0x30] sm:$0xff] %vm355, 0.0
          %363 = vst.msk [vmem:[#allocation4 + $0x38] sm:$0xff] %vm355, 0.0
        $region44: #{eva_attention.3} parent=39 // pred_fallthru
          _
        %v364 = vld [vmem:[%s310] sm:$0xf]
        %v365 = vld [vmem:[%s310 + $0x4] sm:$0xf]
        %v366 = vld [vmem:[%s310 + $0x8] sm:$0xf]
        %v367 = vld [vmem:[%s310 + $0xc] sm:$0xf]
        %v368 = vld [vmem:[%s310 + $0x10] sm:$0xf]
        %v369 = vld [vmem:[%s310 + $0x14] sm:$0xf]
        %v370 = vld [vmem:[%s310 + $0x18] sm:$0xf]
        %v371 = vld [vmem:[%s310 + $0x1c] sm:$0xf]
        %v372 = vld [vmem:[%s320] sm:$0xf]
        %v373 = vld [vmem:[%s320 + $0x4] sm:$0xf]
        %v374 = vld [vmem:[%s320 + $0x8] sm:$0xf]
        %v375 = vld [vmem:[%s320 + $0xc] sm:$0xf]
        %v376 = vld [vmem:[%s320 + $0x10] sm:$0xf]
        %v377 = vld [vmem:[%s320 + $0x14] sm:$0xf]
        %v378 = vld [vmem:[%s320 + $0x18] sm:$0xf]
        %v379 = vld [vmem:[%s320 + $0x1c] sm:$0xf]
        %v380 = vld [vmem:[%s330] sm:$0xf]
        %v381 = vld [vmem:[%s330 + $0x4] sm:$0xf]
        %v382 = vld [vmem:[%s330 + $0x8] sm:$0xf]
        %v383 = vld [vmem:[%s330 + $0xc] sm:$0xf]
        %v384 = vld [vmem:[%s330 + $0x10] sm:$0xf]
        %v385 = vld [vmem:[%s330 + $0x14] sm:$0xf]
        %v386 = vld [vmem:[%s330 + $0x18] sm:$0xf]
        %v387 = vld [vmem:[%s330 + $0x1c] sm:$0xf]
        %v390 = vunpack.c.l.b16 %v364
        %v391 = vunpack.c.l.b16 %v365
        %v392 = vpack.c.b16 %v391, %v390
        %v395 = vunpack.c.l.b16 %v372
        %v396 = vunpack.c.l.b16 %v373
        %v397 = vpack.c.b16 %v396, %v395
        %vm398 = vcmask 64512
        %v400 = vsel %vm398, %v392, 0
        %v403 = vsel %vm398, %v397, 0
        %405 = vmatprep.subr.bf16.mxu0 0
        %406 = vmatpush1.bf16.xpose.msra.mxu0 %v403
        %407 = vmatprep.subr.bf16.mxu0 0
        %408 = vmatpush1.bf16.xpose.msra.mxu0 0
        %409 = vmatprep.subr.bf16.mxu0 0
        %410 = vmatpush1.bf16.xpose.msra.mxu0 0
        %411 = vmatprep.subr.bf16.mxu0 0
        %412 = vmatpush1.bf16.xpose.msra.mxu0 0
        %413 = vmatprep.subr.bf16.mxu0 0
        %414 = vmatpush1.bf16.xpose.msra.mxu0 0
        %415 = vmatprep.subr.bf16.mxu0 0
        %416 = vmatpush1.bf16.xpose.msra.mxu0 0
        %417 = vmatprep.subr.bf16.mxu0 0
        %418 = vmatpush1.bf16.xpose.msra.mxu0 0
        %419 = vmatprep.subr.bf16.mxu0 0
        %420 = vmatpush1.bf16.xpose.msra.mxu0 0
        %421 = vmatprep.subr.bf16.mxu0 0
        %422 = vmatpush1.bf16.xpose.msra.mxu0 0
        %423 = vmatprep.subr.bf16.mxu0 0
        %424 = vmatpush1.bf16.xpose.msra.mxu0 0
        %425 = vmatprep.subr.bf16.mxu0 0
        %426 = vmatpush1.bf16.xpose.msra.mxu0 0
        %427 = vmatprep.subr.bf16.mxu0 0
        %428 = vmatpush1.bf16.xpose.msra.mxu0 0
        %429 = vmatprep.subr.bf16.mxu0 0
        %430 = vmatpush1.bf16.xpose.msra.mxu0 0
        %431 = vmatprep.subr.bf16.mxu0 0
        %432 = vmatpush1.bf16.xpose.msra.mxu0 0
        %433 = vmatprep.subr.bf16.mxu0 0
        %434 = vmatpush1.bf16.xpose.msra.mxu0 0
        %435 = vmatprep.subr.bf16.mxu0 0
        %436 = vmatpush1.bf16.xpose.msra.mxu0 0
        %437 = vmatprep.mubr.bf16.mxu0 0
        %438 = vmatmul.mubr.bf16.gmra.mrb[0].mxu0 %v400
        %v439 = vpop.f32.mrb[0].mxu0
        %v440 = vadd.f32 0.0, %v439
        %v441 = vpop.f32.mrb[0].mxu0
        %v442 = vpop.f32.mrb[0].mxu0
        %v443 = vadd.f32 0.0, %v442
        %v444 = vpop.f32.mrb[0].mxu0
        %445 = vdwg.mxu0
        %v448 = vunpack.c.l.b16 %v366
        %v449 = vunpack.c.l.b16 %v367
        %v450 = vpack.c.b16 %v449, %v448
        %v453 = vunpack.c.l.b16 %v374
        %v454 = vunpack.c.l.b16 %v375
        %v455 = vpack.c.b16 %v454, %v453
        %v457 = vsel %vm398, %v450, 0
        %v460 = vsel %vm398, %v455, 0
        %462 = vmatprep.subr.bf16.mxu0 0
        %463 = vmatpush1.bf16.xpose.msra.mxu0 %v460
        %464 = vmatprep.subr.bf16.mxu0 0
        %465 = vmatpush1.bf16.xpose.msra.mxu0 0
        %466 = vmatprep.subr.bf16.mxu0 0
        %467 = vmatpush1.bf16.xpose.msra.mxu0 0
        %468 = vmatprep.subr.bf16.mxu0 0
        %469 = vmatpush1.bf16.xpose.msra.mxu0 0
        %470 = vmatprep.subr.bf16.mxu0 0
        %471 = vmatpush1.bf16.xpose.msra.mxu0 0
        %472 = vmatprep.subr.bf16.mxu0 0
        %473 = vmatpush1.bf16.xpose.msra.mxu0 0
        %474 = vmatprep.subr.bf16.mxu0 0
        %475 = vmatpush1.bf16.xpose.msra.mxu0 0
        %476 = vmatprep.subr.bf16.mxu0 0
        %477 = vmatpush1.bf16.xpose.msra.mxu0 0
        %478 = vmatprep.subr.bf16.mxu0 0
        %479 = vmatpush1.bf16.xpose.msra.mxu0 0
        %480 = vmatprep.subr.bf16.mxu0 0
        %481 = vmatpush1.bf16.xpose.msra.mxu0 0
        %482 = vmatprep.subr.bf16.mxu0 0
        %483 = vmatpush1.bf16.xpose.msra.mxu0 0
        %484 = vmatprep.subr.bf16.mxu0 0
        %485 = vmatpush1.bf16.xpose.msra.mxu0 0
        %486 = vmatprep.subr.bf16.mxu0 0
        %487 = vmatpush1.bf16.xpose.msra.mxu0 0
        %488 = vmatprep.subr.bf16.mxu0 0
        %489 = vmatpush1.bf16.xpose.msra.mxu0 0
        %490 = vmatprep.subr.bf16.mxu0 0
        %491 = vmatpush1.bf16.xpose.msra.mxu0 0
        %492 = vmatprep.subr.bf16.mxu0 0
        %493 = vmatpush1.bf16.xpose.msra.mxu0 0
        %494 = vmatprep.mubr.bf16.mxu0 0
        %495 = vmatmul.mubr.bf16.gmra.mrb[0].mxu0 %v457
        %v496 = vpop.f32.mrb[0].mxu0
        %v497 = vadd.f32 0.0, %v496
        %v498 = vpop.f32.mrb[0].mxu0
        %v499 = vpop.f32.mrb[0].mxu0
        %v500 = vadd.f32 0.0, %v499
        %v501 = vpop.f32.mrb[0].mxu0
        %502 = vdwg.mxu0
        %v505 = vunpack.c.l.b16 %v368
        %v506 = vunpack.c.l.b16 %v369
        %v507 = vpack.c.b16 %v506, %v505
        %v510 = vunpack.c.l.b16 %v376
        %v511 = vunpack.c.l.b16 %v377
        %v512 = vpack.c.b16 %v511, %v510
        %v514 = vsel %vm398, %v507, 0
        %v517 = vsel %vm398, %v512, 0
        %519 = vmatprep.subr.bf16.mxu0 0
        %520 = vmatpush1.bf16.xpose.msra.mxu0 %v517
        %521 = vmatprep.subr.bf16.mxu0 0
        %522 = vmatpush1.bf16.xpose.msra.mxu0 0
        %523 = vmatprep.subr.bf16.mxu0 0
        %524 = vmatpush1.bf16.xpose.msra.mxu0 0
        %525 = vmatprep.subr.bf16.mxu0 0
        %526 = vmatpush1.bf16.xpose.msra.mxu0 0
        %527 = vmatprep.subr.bf16.mxu0 0
        %528 = vmatpush1.bf16.xpose.msra.mxu0 0
        %529 = vmatprep.subr.bf16.mxu0 0
        %530 = vmatpush1.bf16.xpose.msra.mxu0 0
        %531 = vmatprep.subr.bf16.mxu0 0
        %532 = vmatpush1.bf16.xpose.msra.mxu0 0
        %533 = vmatprep.subr.bf16.mxu0 0
        %534 = vmatpush1.bf16.xpose.msra.mxu0 0
        %535 = vmatprep.subr.bf16.mxu0 0
        %536 = vmatpush1.bf16.xpose.msra.mxu0 0
        %537 = vmatprep.subr.bf16.mxu0 0
        %538 = vmatpush1.bf16.xpose.msra.mxu0 0
        %539 = vmatprep.subr.bf16.mxu0 0
        %540 = vmatpush1.bf16.xpose.msra.mxu0 0
        %541 = vmatprep.subr.bf16.mxu0 0
        %542 = vmatpush1.bf16.xpose.msra.mxu0 0
        %543 = vmatprep.subr.bf16.mxu0 0
        %544 = vmatpush1.bf16.xpose.msra.mxu0 0
        %545 = vmatprep.subr.bf16.mxu0 0
        %546 = vmatpush1.bf16.xpose.msra.mxu0 0
        %547 = vmatprep.subr.bf16.mxu0 0
        %548 = vmatpush1.bf16.xpose.msra.mxu0 0
        %549 = vmatprep.subr.bf16.mxu0 0
        %550 = vmatpush1.bf16.xpose.msra.mxu0 0
        %551 = vmatprep.mubr.bf16.mxu0 0
        %552 = vmatmul.mubr.bf16.gmra.mrb[0].mxu0 %v514
        %v553 = vpop.f32.mrb[0].mxu0
        %v554 = vadd.f32 0.0, %v553
        %v555 = vpop.f32.mrb[0].mxu0
        %v556 = vpop.f32.mrb[0].mxu0
        %v557 = vadd.f32 0.0, %v556
        %v558 = vpop.f32.mrb[0].mxu0
        %559 = vdwg.mxu0
        %v562 = vunpack.c.l.b16 %v370
        %v563 = vunpack.c.l.b16 %v371
        %v564 = vpack.c.b16 %v563, %v562
        %v567 = vunpack.c.l.b16 %v378
        %v568 = vunpack.c.l.b16 %v379
        %v569 = vpack.c.b16 %v568, %v567
        %v571 = vsel %vm398, %v564, 0
        %v574 = vsel %vm398, %v569, 0
        %576 = vmatprep.subr.bf16.mxu0 0
        %577 = vmatpush1.bf16.xpose.msra.mxu0 %v574
        %578 = vmatprep.subr.bf16.mxu0 0
        %579 = vmatpush1.bf16.xpose.msra.mxu0 0
        %580 = vmatprep.subr.bf16.mxu0 0
        %581 = vmatpush1.bf16.xpose.msra.mxu0 0
        %582 = vmatprep.subr.bf16.mxu0 0
        %583 = vmatpush1.bf16.xpose.msra.mxu0 0
        %584 = vmatprep.subr.bf16.mxu0 0
        %585 = vmatpush1.bf16.xpose.msra.mxu0 0
        %586 = vmatprep.subr.bf16.mxu0 0
        %587 = vmatpush1.bf16.xpose.msra.mxu0 0
        %588 = vmatprep.subr.bf16.mxu0 0
        %589 = vmatpush1.bf16.xpose.msra.mxu0 0
        %590 = vmatprep.subr.bf16.mxu0 0
        %591 = vmatpush1.bf16.xpose.msra.mxu0 0
        %592 = vmatprep.subr.bf16.mxu0 0
        %593 = vmatpush1.bf16.xpose.msra.mxu0 0
        %594 = vmatprep.subr.bf16.mxu0 0
        %595 = vmatpush1.bf16.xpose.msra.mxu0 0
        %596 = vmatprep.subr.bf16.mxu0 0
        %597 = vmatpush1.bf16.xpose.msra.mxu0 0
        %598 = vmatprep.subr.bf16.mxu0 0
        %599 = vmatpush1.bf16.xpose.msra.mxu0 0
        %600 = vmatprep.subr.bf16.mxu0 0
        %601 = vmatpush1.bf16.xpose.msra.mxu0 0
        %602 = vmatprep.subr.bf16.mxu0 0
        %603 = vmatpush1.bf16.xpose.msra.mxu0 0
        %604 = vmatprep.subr.bf16.mxu0 0
        %605 = vmatpush1.bf16.xpose.msra.mxu0 0
        %606 = vmatprep.subr.bf16.mxu0 0
        %607 = vmatpush1.bf16.xpose.msra.mxu0 0
        %608 = vmatprep.mubr.bf16.mxu0 0
        %609 = vmatmul.mubr.bf16.gmra.mrb[0].mxu0 %v571
        %v610 = vpop.f32.mrb[0].mxu0
        %v611 = vadd.f32 0.0, %v610
        %v612 = vpop.f32.mrb[0].mxu0
        %v613 = vpop.f32.mrb[0].mxu0
        %v614 = vadd.f32 0.0, %v613
        %v615 = vpop.f32.mrb[0].mxu0
        %616 = vdwg.mxu0
        %v617 = vld [vmem:[#allocation2] sm:$0xff]
        %v618 = vld [vmem:[#allocation2 + $0x8] sm:$0xff]
        %v619 = vld [vmem:[#allocation2 + $0x10] sm:$0xff]
        %v620 = vld [vmem:[#allocation2 + $0x18] sm:$0xff]
        %v621 = vld [vmem:[#allocation2 + $0x20] sm:$0xff]
        %v622 = vld [vmem:[#allocation2 + $0x28] sm:$0xff]
        %v623 = vld [vmem:[#allocation2 + $0x30] sm:$0xff]
        %v624 = vld [vmem:[#allocation2 + $0x38] sm:$0xff]
        %vm625 = vcmask 130048
        %v626 = vsel %vm625, %v440, -inf
        %627 = vmax.xlane.f32.xlu0 %v626
        %v628 = vpop.xlane.xlu0 %627
        %v629 = vsel %vm625, %v443, -inf
        %630 = vmax.xlane.f32.xlu0 %v629
        %v631 = vpop.xlane.xlu0 %630
        %v632 = vsel %vm625, %v497, -inf
        %633 = vmax.xlane.f32.xlu0 %v632
        %v634 = vpop.xlane.xlu0 %633
        %v635 = vsel %vm625, %v500, -inf
        %636 = vmax.xlane.f32.xlu0 %v635
        %v637 = vpop.xlane.xlu0 %636
        %v638 = vsel %vm625, %v554, -inf
        %639 = vmax.xlane.f32.xlu0 %v638
        %v640 = vpop.xlane.xlu0 %639
        %v641 = vsel %vm625, %v557, -inf
        %642 = vmax.xlane.f32.xlu0 %v641
        %v643 = vpop.xlane.xlu0 %642
        %v644 = vsel %vm625, %v611, -inf
        %645 = vmax.xlane.f32.xlu0 %v644
        %v646 = vpop.xlane.xlu0 %645
        %v647 = vsel %vm625, %v614, -inf
        %648 = vmax.xlane.f32.xlu0 %v647
        %v649 = vpop.xlane.xlu0 %648
        %v650 = vmax.f32 %v617, %v628
        %v651 = vmax.f32 %v618, %v631
        %v652 = vmax.f32 %v619, %v634
        %v653 = vmax.f32 %v620, %v637
        %v654 = vmax.f32 %v621, %v640
        %v655 = vmax.f32 %v622, %v643
        %v656 = vmax.f32 %v623, %v646
        %v657 = vmax.f32 %v624, %v649
        %v658 = vsub.f32 %v617, %v650
        %v659 = vsub.f32 %v618, %v651
        %v660 = vsub.f32 %v619, %v652
        %v661 = vsub.f32 %v620, %v653
        %v662 = vsub.f32 %v621, %v654
        %v663 = vsub.f32 %v622, %v655
        %v664 = vsub.f32 %v623, %v656
        %v665 = vsub.f32 %v624, %v657
        %v666 = vmul.f32 %v658, 1.442695
        %v667 = vpow.pop %v666
        %v668 = vmul.f32 %v659, 1.442695
        %v669 = vpow.pop %v668
        %v670 = vmul.f32 %v660, 1.442695
        %v671 = vpow.pop %v670
        %v672 = vmul.f32 %v661, 1.442695
        %v673 = vpow.pop %v672
        %v674 = vmul.f32 %v662, 1.442695
        %v675 = vpow.pop %v674
        %v676 = vmul.f32 %v663, 1.442695
        %v677 = vpow.pop %v676
        %v678 = vmul.f32 %v664, 1.442695
        %v679 = vpow.pop %v678
        %v680 = vmul.f32 %v665, 1.442695
        %v681 = vpow.pop %v680
        %683 = vset.pattern.permute.xlu0 0
        %684 = vperm.xlu0 %683, %v650
        %v685 = vpop.permute.xlu0 %684
        %688 = vset.pattern.permute.xlu0 0
        %689 = vperm.xlu0 %688, %v651
        %v690 = vpop.permute.xlu0 %689
        %693 = vset.pattern.permute.xlu0 0
        %694 = vperm.xlu0 %693, %v652
        %v695 = vpop.permute.xlu0 %694
        %698 = vset.pattern.permute.xlu0 0
        %699 = vperm.xlu0 %698, %v653
        %v700 = vpop.permute.xlu0 %699
        %703 = vset.pattern.permute.xlu0 0
        %704 = vperm.xlu0 %703, %v654
        %v705 = vpop.permute.xlu0 %704
        %708 = vset.pattern.permute.xlu0 0
        %709 = vperm.xlu0 %708, %v655
        %v710 = vpop.permute.xlu0 %709
        %713 = vset.pattern.permute.xlu0 0
        %714 = vperm.xlu0 %713, %v656
        %v715 = vpop.permute.xlu0 %714
        %718 = vset.pattern.permute.xlu0 0
        %719 = vperm.xlu0 %718, %v657
        %v720 = vpop.permute.xlu0 %719
        %v722 = vsub.f32 %v440, %v685
        %v723 = vsub.f32 %v443, %v690
        %v724 = vsub.f32 %v497, %v695
        %v725 = vsub.f32 %v500, %v700
        %v726 = vsub.f32 %v554, %v705
        %v727 = vsub.f32 %v557, %v710
        %v728 = vsub.f32 %v611, %v715
        %v729 = vsub.f32 %v614, %v720
        %v730 = vmul.f32 %v722, 1.442695
        %v731 = vpow.pop %v730
        %v732 = vmul.f32 %v723, 1.442695
        %v733 = vpow.pop %v732
        %v734 = vmul.f32 %v724, 1.442695
        %v735 = vpow.pop %v734
        %v736 = vmul.f32 %v725, 1.442695
        %v737 = vpow.pop %v736
        %v738 = vmul.f32 %v726, 1.442695
        %v739 = vpow.pop %v738
        %v740 = vmul.f32 %v727, 1.442695
        %v741 = vpow.pop %v740
        %v742 = vmul.f32 %v728, 1.442695
        %v743 = vpow.pop %v742
        %v744 = vmul.f32 %v729, 1.442695
        %v745 = vpow.pop %v744
        %v746 = vld [vmem:[#allocation3] sm:$0xff]
        %v747 = vld [vmem:[#allocation3 + $0x8] sm:$0xff]
        %v748 = vld [vmem:[#allocation3 + $0x10] sm:$0xff]
        %v749 = vld [vmem:[#allocation3 + $0x18] sm:$0xff]
        %v750 = vld [vmem:[#allocation3 + $0x20] sm:$0xff]
        %v751 = vld [vmem:[#allocation3 + $0x28] sm:$0xff]
        %v752 = vld [vmem:[#allocation3 + $0x30] sm:$0xff]
        %v753 = vld [vmem:[#allocation3 + $0x38] sm:$0xff]
        %v754 = vmul.f32 %v667, %v746
        %v755 = vmul.f32 %v669, %v747
        %v756 = vmul.f32 %v671, %v748
        %v757 = vmul.f32 %v673, %v749
        %v758 = vmul.f32 %v675, %v750
        %v759 = vmul.f32 %v677, %v751
        %v760 = vmul.f32 %v679, %v752
        %v761 = vmul.f32 %v681, %v753
        %v762 = vsel %vm625, %v731, 0.0
        %763 = vadd.xlane.f32.xlu0 %v762
        %v764 = vpop.xlane.xlu0 %763
        %v765 = vsel %vm625, %v733, 0.0
        %766 = vadd.xlane.f32.xlu0 %v765
        %v767 = vpop.xlane.xlu0 %766
        %v768 = vsel %vm625, %v735, 0.0
        %769 = vadd.xlane.f32.xlu0 %v768
        %v770 = vpop.xlane.xlu0 %769
        %v771 = vsel %vm625, %v737, 0.0
        %772 = vadd.xlane.f32.xlu0 %v771
        %v773 = vpop.xlane.xlu0 %772
        %v774 = vsel %vm625, %v739, 0.0
        %775 = vadd.xlane.f32.xlu0 %v774
        %v776 = vpop.xlane.xlu0 %775
        %v777 = vsel %vm625, %v741, 0.0
        %778 = vadd.xlane.f32.xlu0 %v777
        %v779 = vpop.xlane.xlu0 %778
        %v780 = vsel %vm625, %v743, 0.0
        %781 = vadd.xlane.f32.xlu0 %v780
        %v782 = vpop.xlane.xlu0 %781
        %v783 = vsel %vm625, %v745, 0.0
        %784 = vadd.xlane.f32.xlu0 %v783
        %v785 = vpop.xlane.xlu0 %784
        %v786 = vadd.f32 %v754, %v764
        %v787 = vadd.f32 %v755, %v767
        %v788 = vadd.f32 %v756, %v770
        %v789 = vadd.f32 %v757, %v773
        %v790 = vadd.f32 %v758, %v776
        %v791 = vadd.f32 %v759, %v779
        %v792 = vadd.f32 %v760, %v782
        %v793 = vadd.f32 %v761, %v785
        %vm794 = vcmask 7168
        %795 = vst.msk [vmem:[#allocation3] sm:$0xff] %vm794, %v786
        %796 = vst.msk [vmem:[#allocation3 + $0x8] sm:$0xff] %vm794, %v787
        %797 = vst.msk [vmem:[#allocation3 + $0x10] sm:$0xff] %vm794, %v788
        %798 = vst.msk [vmem:[#allocation3 + $0x18] sm:$0xff] %vm794, %v789
        %799 = vst.msk [vmem:[#allocation3 + $0x20] sm:$0xff] %vm794, %v790
        %800 = vst.msk [vmem:[#allocation3 + $0x28] sm:$0xff] %vm794, %v791
        %801 = vst.msk [vmem:[#allocation3 + $0x30] sm:$0xff] %vm794, %v792
        %802 = vst.msk [vmem:[#allocation3 + $0x38] sm:$0xff] %vm794, %v793
        %v803 = vld [vmem:[#allocation4] sm:$0xff]
        %v804 = vld [vmem:[#allocation4 + $0x8] sm:$0xff]
        %v805 = vld [vmem:[#allocation4 + $0x10] sm:$0xff]
        %v806 = vld [vmem:[#allocation4 + $0x18] sm:$0xff]
        %v807 = vld [vmem:[#allocation4 + $0x20] sm:$0xff]
        %v808 = vld [vmem:[#allocation4 + $0x28] sm:$0xff]
        %v809 = vld [vmem:[#allocation4 + $0x30] sm:$0xff]
        %v810 = vld [vmem:[#allocation4 + $0x38] sm:$0xff]
        %812 = vset.pattern.permute.xlu0 0
        %813 = vperm.xlu0 %812, %v667
        %v814 = vpop.permute.xlu0 %813
        %817 = vset.pattern.permute.xlu0 0
        %818 = vperm.xlu0 %817, %v669
        %v819 = vpop.permute.xlu0 %818
        %822 = vset.pattern.permute.xlu0 0
        %823 = vperm.xlu0 %822, %v671
        %v824 = vpop.permute.xlu0 %823
        %827 = vset.pattern.permute.xlu0 0
        %828 = vperm.xlu0 %827, %v673
        %v829 = vpop.permute.xlu0 %828
        %832 = vset.pattern.permute.xlu0 0
        %833 = vperm.xlu0 %832, %v675
        %v834 = vpop.permute.xlu0 %833
        %837 = vset.pattern.permute.xlu0 0
        %838 = vperm.xlu0 %837, %v677
        %v839 = vpop.permute.xlu0 %838
        %842 = vset.pattern.permute.xlu0 0
        %843 = vperm.xlu0 %842, %v679
        %v844 = vpop.permute.xlu0 %843
        %847 = vset.pattern.permute.xlu0 0
        %848 = vperm.xlu0 %847, %v681
        %v849 = vpop.permute.xlu0 %848
        %v851 = vmul.f32 %v814, %v803
        %v852 = vmul.f32 %v819, %v804
        %v853 = vmul.f32 %v824, %v805
        %v854 = vmul.f32 %v829, %v806
        %v855 = vmul.f32 %v834, %v807
        %v856 = vmul.f32 %v839, %v808
        %v857 = vmul.f32 %v844, %v809
        %v858 = vmul.f32 %v849, %v810
        %v859 = vpack.c.bf16 %v733, %v731
        %v860 = vpack.c.bf16 %v737, %v735
        %v861 = vpack.c.bf16 %v741, %v739
        %v862 = vpack.c.bf16 %v745, %v743
        %v865 = vunpack.c.l.b16 %v380
        %v866 = vunpack.c.l.b16 %v381
        %v867 = vpack.c.b16 %v866, %v865
        %v870 = vsel %vm625, %v859, 0
        %872 = vmatprep.subr.bf16.mxu0 0
        %873 = vmatpush1.bf16.msra.mxu0 %v867
        %874 = vmatprep.subr.bf16.mxu0 0
        %875 = vmatpush1.bf16.msra.mxu0 0
        %876 = vmatprep.subr.bf16.mxu0 0
        %877 = vmatpush1.bf16.msra.mxu0 0
        %878 = vmatprep.subr.bf16.mxu0 0
        %879 = vmatpush1.bf16.msra.mxu0 0
        %880 = vmatprep.subr.bf16.mxu0 0
        %881 = vmatpush1.bf16.msra.mxu0 0
        %882 = vmatprep.subr.bf16.mxu0 0
        %883 = vmatpush1.bf16.msra.mxu0 0
        %884 = vmatprep.subr.bf16.mxu0 0
        %885 = vmatpush1.bf16.msra.mxu0 0
        %886 = vmatprep.subr.bf16.mxu0 0
        %887 = vmatpush1.bf16.msra.mxu0 0
        %888 = vmatprep.subr.bf16.mxu0 0
        %889 = vmatpush1.bf16.msra.mxu0 0
        %890 = vmatprep.subr.bf16.mxu0 0
        %891 = vmatpush1.bf16.msra.mxu0 0
        %892 = vmatprep.subr.bf16.mxu0 0
        %893 = vmatpush1.bf16.msra.mxu0 0
        %894 = vmatprep.subr.bf16.mxu0 0
        %895 = vmatpush1.bf16.msra.mxu0 0
        %896 = vmatprep.subr.bf16.mxu0 0
        %897 = vmatpush1.bf16.msra.mxu0 0
        %898 = vmatprep.subr.bf16.mxu0 0
        %899 = vmatpush1.bf16.msra.mxu0 0
        %900 = vmatprep.subr.bf16.mxu0 0
        %901 = vmatpush1.bf16.msra.mxu0 0
        %902 = vmatprep.subr.bf16.mxu0 0
        %903 = vmatpush1.bf16.msra.mxu0 0
        %904 = vmatprep.mubr.bf16.mxu0 0
        %905 = vmatmul.mubr.bf16.gmra.mrb[0].mxu0 %v870
        %v906 = vpop.f32.mrb[0].mxu0
        %v907 = vadd.f32 0.0, %v906
        %v908 = vpop.f32.mrb[0].mxu0
        %v909 = vpop.f32.mrb[0].mxu0
        %v910 = vadd.f32 0.0, %v909
        %v911 = vpop.f32.mrb[0].mxu0
        %912 = vdwg.mxu0
        %v915 = vunpack.c.l.b16 %v382
        %v916 = vunpack.c.l.b16 %v383
        %v917 = vpack.c.b16 %v916, %v915
        %v920 = vsel %vm625, %v860, 0
        %922 = vmatprep.subr.bf16.mxu0 0
        %923 = vmatpush1.bf16.msra.mxu0 %v917
        %924 = vmatprep.subr.bf16.mxu0 0
        %925 = vmatpush1.bf16.msra.mxu0 0
        %926 = vmatprep.subr.bf16.mxu0 0
        %927 = vmatpush1.bf16.msra.mxu0 0
        %928 = vmatprep.subr.bf16.mxu0 0
        %929 = vmatpush1.bf16.msra.mxu0 0
        %930 = vmatprep.subr.bf16.mxu0 0
        %931 = vmatpush1.bf16.msra.mxu0 0
        %932 = vmatprep.subr.bf16.mxu0 0
        %933 = vmatpush1.bf16.msra.mxu0 0
        %934 = vmatprep.subr.bf16.mxu0 0
        %935 = vmatpush1.bf16.msra.mxu0 0
        %936 = vmatprep.subr.bf16.mxu0 0
        %937 = vmatpush1.bf16.msra.mxu0 0
        %938 = vmatprep.subr.bf16.mxu0 0
        %939 = vmatpush1.bf16.msra.mxu0 0
        %940 = vmatprep.subr.bf16.mxu0 0
        %941 = vmatpush1.bf16.msra.mxu0 0
        %942 = vmatprep.subr.bf16.mxu0 0
        %943 = vmatpush1.bf16.msra.mxu0 0
        %944 = vmatprep.subr.bf16.mxu0 0
        %945 = vmatpush1.bf16.msra.mxu0 0
        %946 = vmatprep.subr.bf16.mxu0 0
        %947 = vmatpush1.bf16.msra.mxu0 0
        %948 = vmatprep.subr.bf16.mxu0 0
        %949 = vmatpush1.bf16.msra.mxu0 0
        %950 = vmatprep.subr.bf16.mxu0 0
        %951 = vmatpush1.bf16.msra.mxu0 0
        %952 = vmatprep.subr.bf16.mxu0 0
        %953 = vmatpush1.bf16.msra.mxu0 0
        %954 = vmatprep.mubr.bf16.mxu0 0
        %955 = vmatmul.mubr.bf16.gmra.mrb[0].mxu0 %v920
        %v956 = vpop.f32.mrb[0].mxu0
        %v957 = vadd.f32 0.0, %v956
        %v958 = vpop.f32.mrb[0].mxu0
        %v959 = vpop.f32.mrb[0].mxu0
        %v960 = vadd.f32 0.0, %v959
        %v961 = vpop.f32.mrb[0].mxu0
        %962 = vdwg.mxu0
        %v965 = vunpack.c.l.b16 %v384
        %v966 = vunpack.c.l.b16 %v385
        %v967 = vpack.c.b16 %v966, %v965
        %v970 = vsel %vm625, %v861, 0
        %972 = vmatprep.subr.bf16.mxu0 0
        %973 = vmatpush1.bf16.msra.mxu0 %v967
        %974 = vmatprep.subr.bf16.mxu0 0
        %975 = vmatpush1.bf16.msra.mxu0 0
        %976 = vmatprep.subr.bf16.mxu0 0
        %977 = vmatpush1.bf16.msra.mxu0 0
        %978 = vmatprep.subr.bf16.mxu0 0
        %979 = vmatpush1.bf16.msra.mxu0 0
        %980 = vmatprep.subr.bf16.mxu0 0
        %981 = vmatpush1.bf16.msra.mxu0 0
        %982 = vmatprep.subr.bf16.mxu0 0
        %983 = vmatpush1.bf16.msra.mxu0 0
        %984 = vmatprep.subr.bf16.mxu0 0
        %985 = vmatpush1.bf16.msra.mxu0 0
        %986 = vmatprep.subr.bf16.mxu0 0
        %987 = vmatpush1.bf16.msra.mxu0 0
        %988 = vmatprep.subr.bf16.mxu0 0
        %989 = vmatpush1.bf16.msra.mxu0 0
        %990 = vmatprep.subr.bf16.mxu0 0
        %991 = vmatpush1.bf16.msra.mxu0 0
        %992 = vmatprep.subr.bf16.mxu0 0
        %993 = vmatpush1.bf16.msra.mxu0 0
        %994 = vmatprep.subr.bf16.mxu0 0
        %995 = vmatpush1.bf16.msra.mxu0 0
        %996 = vmatprep.subr.bf16.mxu0 0
        %997 = vmatpush1.bf16.msra.mxu0 0
        %998 = vmatprep.subr.bf16.mxu0 0
        %999 = vmatpush1.bf16.msra.mxu0 0
        %1000 = vmatprep.subr.bf16.mxu0 0
        %1001 = vmatpush1.bf16.msra.mxu0 0
        %1002 = vmatprep.subr.bf16.mxu0 0
        %1003 = vmatpush1.bf16.msra.mxu0 0
        %1004 = vmatprep.mubr.bf16.mxu0 0
        %1005 = vmatmul.mubr.bf16.gmra.mrb[0].mxu0 %v970
        %v1006 = vpop.f32.mrb[0].mxu0
        %v1007 = vadd.f32 0.0, %v1006
        %v1008 = vpop.f32.mrb[0].mxu0
        %v1009 = vpop.f32.mrb[0].mxu0
        %v1010 = vadd.f32 0.0, %v1009
        %v1011 = vpop.f32.mrb[0].mxu0
        %1012 = vdwg.mxu0
        %v1015 = vunpack.c.l.b16 %v386
        %v1016 = vunpack.c.l.b16 %v387
        %v1017 = vpack.c.b16 %v1016, %v1015
        %v1020 = vsel %vm625, %v862, 0
        %1022 = vmatprep.subr.bf16.mxu0 0
        %1023 = vmatpush1.bf16.msra.mxu0 %v1017
        %1024 = vmatprep.subr.bf16.mxu0 0
        %1025 = vmatpush1.bf16.msra.mxu0 0
        %1026 = vmatprep.subr.bf16.mxu0 0
        %1027 = vmatpush1.bf16.msra.mxu0 0
        %1028 = vmatprep.subr.bf16.mxu0 0
        %1029 = vmatpush1.bf16.msra.mxu0 0
        %1030 = vmatprep.subr.bf16.mxu0 0
        %1031 = vmatpush1.bf16.msra.mxu0 0
        %1032 = vmatprep.subr.bf16.mxu0 0
        %1033 = vmatpush1.bf16.msra.mxu0 0
        %1034 = vmatprep.subr.bf16.mxu0 0
        %1035 = vmatpush1.bf16.msra.mxu0 0
        %1036 = vmatprep.subr.bf16.mxu0 0
        %1037 = vmatpush1.bf16.msra.mxu0 0
        %1038 = vmatprep.subr.bf16.mxu0 0
        %1039 = vmatpush1.bf16.msra.mxu0 0
        %1040 = vmatprep.subr.bf16.mxu0 0
        %1041 = vmatpush1.bf16.msra.mxu0 0
        %1042 = vmatprep.subr.bf16.mxu0 0
        %1043 = vmatpush1.bf16.msra.mxu0 0
        %1044 = vmatprep.subr.bf16.mxu0 0
        %1045 = vmatpush1.bf16.msra.mxu0 0
        %1046 = vmatprep.subr.bf16.mxu0 0
        %1047 = vmatpush1.bf16.msra.mxu0 0
        %1048 = vmatprep.subr.bf16.mxu0 0
        %1049 = vmatpush1.bf16.msra.mxu0 0
        %1050 = vmatprep.subr.bf16.mxu0 0
        %1051 = vmatpush1.bf16.msra.mxu0 0
        %1052 = vmatprep.subr.bf16.mxu0 0
        %1053 = vmatpush1.bf16.msra.mxu0 0
        %1054 = vmatprep.mubr.bf16.mxu0 0
        %1055 = vmatmul.mubr.bf16.gmra.mrb[0].mxu0 %v1020
        %v1056 = vpop.f32.mrb[0].mxu0
        %v1057 = vadd.f32 0.0, %v1056
        %v1058 = vpop.f32.mrb[0].mxu0
        %v1059 = vpop.f32.mrb[0].mxu0
        %v1060 = vadd.f32 0.0, %v1059
        %v1061 = vpop.f32.mrb[0].mxu0
        %1062 = vdwg.mxu0
        %v1063 = vadd.f32 %v851, %v907
        %v1064 = vadd.f32 %v852, %v910
        %v1065 = vadd.f32 %v853, %v957
        %v1066 = vadd.f32 %v854, %v960
        %v1067 = vadd.f32 %v855, %v1007
        %v1068 = vadd.f32 %v856, %v1010
        %v1069 = vadd.f32 %v857, %v1057
        %v1070 = vadd.f32 %v858, %v1060
        %1071 = vst.msk [vmem:[#allocation4] sm:$0xff] %vm398, %v1063
        %1072 = vst.msk [vmem:[#allocation4 + $0x8] sm:$0xff] %vm398, %v1064
        %1073 = vst.msk [vmem:[#allocation4 + $0x10] sm:$0xff] %vm398, %v1065
        %1074 = vst.msk [vmem:[#allocation4 + $0x18] sm:$0xff] %vm398, %v1066
        %1075 = vst.msk [vmem:[#allocation4 + $0x20] sm:$0xff] %vm398, %v1067
        %1076 = vst.msk [vmem:[#allocation4 + $0x28] sm:$0xff] %vm398, %v1068
        %1077 = vst.msk [vmem:[#allocation4 + $0x30] sm:$0xff] %vm398, %v1069
        %1078 = vst.msk [vmem:[#allocation4 + $0x38] sm:$0xff] %vm398, %v1070
        %1079 = vst.msk [vmem:[#allocation2] sm:$0xff] %vm794, %v650
        %1080 = vst.msk [vmem:[#allocation2 + $0x8] sm:$0xff] %vm794, %v651
        %1081 = vst.msk [vmem:[#allocation2 + $0x10] sm:$0xff] %vm794, %v652
        %1082 = vst.msk [vmem:[#allocation2 + $0x18] sm:$0xff] %vm794, %v653
        %1083 = vst.msk [vmem:[#allocation2 + $0x20] sm:$0xff] %vm794, %v654
        %1084 = vst.msk [vmem:[#allocation2 + $0x28] sm:$0xff] %vm794, %v655
        %1085 = vst.msk [vmem:[#allocation2 + $0x30] sm:$0xff] %vm794, %v656
        %1086 = vst.msk [vmem:[#allocation2 + $0x38] sm:$0xff] %vm794, %v657
        // Predicated region
        $region45: #{eva_attention.3} parent=39 // pred_check
          %p1087 = pneg %p334
        $region46: #{eva_attention.3} parent=39 // pred_check_branch
          %1089 = sbr.rel (%p1087) target = $region48
        $region47: #{eva_attention.3} parent=39 // pred_region
          %v1090 = vld [vmem:[#allocation3] sm:$0xff]
          %v1091 = vld [vmem:[#allocation3 + $0x8] sm:$0xff]
          %v1092 = vld [vmem:[#allocation3 + $0x10] sm:$0xff]
          %v1093 = vld [vmem:[#allocation3 + $0x18] sm:$0xff]
          %v1094 = vld [vmem:[#allocation3 + $0x20] sm:$0xff]
          %v1095 = vld [vmem:[#allocation3 + $0x28] sm:$0xff]
          %v1096 = vld [vmem:[#allocation3 + $0x30] sm:$0xff]
          %v1097 = vld [vmem:[#allocation3 + $0x38] sm:$0xff]
          %v1098 = vrcp.pop %v1090
          %v1099 = vrcp.pop %v1091
          %v1100 = vrcp.pop %v1092
          %v1101 = vrcp.pop %v1093
          %v1102 = vrcp.pop %v1094
          %v1103 = vrcp.pop %v1095
          %v1104 = vrcp.pop %v1096
          %v1105 = vrcp.pop %v1097
          %v1106 = vld [vmem:[#allocation4] sm:$0xff]
          %v1107 = vld [vmem:[#allocation4 + $0x8] sm:$0xff]
          %1109 = vset.pattern.permute.xlu0 0
          %1110 = vperm.xlu0 %1109, %v1098
          %v1111 = vpop.permute.xlu0 %1110
          %1114 = vset.pattern.permute.xlu0 0
          %1115 = vperm.xlu0 %1114, %v1099
          %v1116 = vpop.permute.xlu0 %1115
          %v1118 = vmul.f32 %v1106, %v1111
          %v1119 = vmul.f32 %v1107, %v1116
          %1120 = vst.msk [vmem:[#allocation5] sm:$0xff] %vm398, %v1118
          %1121 = vst.msk [vmem:[#allocation5 + $0x8] sm:$0xff] %vm398, %v1119
          %s1122 = scalar_lea.vmem [#allocation4], 16
          %v1123 = vld [vmem:[%s1122] sm:$0xff]
          %v1124 = vld [vmem:[%s1122 + $0x8] sm:$0xff]
          %1126 = vset.pattern.permute.xlu0 0
          %1127 = vperm.xlu0 %1126, %v1100
          %v1128 = vpop.permute.xlu0 %1127
          %1131 = vset.pattern.permute.xlu0 0
          %1132 = vperm.xlu0 %1131, %v1101
          %v1133 = vpop.permute.xlu0 %1132
          %v1135 = vmul.f32 %v1123, %v1128
          %v1136 = vmul.f32 %v1124, %v1133
          %1139 = vrot.lane.b32.xlu0 %v1135, 8
          %v1140 = vpop.permute.xlu0 %1139
          %1141 = vrot.lane.b32.xlu0 %v1136, 8
          %v1142 = vpop.permute.xlu0 %1141
          %vm1145 = vcmask 130112
          %1146 = vst.msk [vmem:[#allocation5] sm:$0xff] %vm1145, %v1140
          %1147 = vst.msk [vmem:[#allocation5 + $0x8] sm:$0xff] %vm1145, %v1142
          %s1148 = scalar_lea.vmem [#allocation4], 32
          %v1149 = vld [vmem:[%s1148] sm:$0xff]
          %v1150 = vld [vmem:[%s1148 + $0x8] sm:$0xff]
          %1152 = vset.pattern.permute.xlu0 0
          %1153 = vperm.xlu0 %1152, %v1102
          %v1154 = vpop.permute.xlu0 %1153
          %1157 = vset.pattern.permute.xlu0 0
          %1158 = vperm.xlu0 %1157, %v1103
          %v1159 = vpop.permute.xlu0 %1158
          %v1161 = vmul.f32 %v1149, %v1154
          %v1162 = vmul.f32 %v1150, %v1159
          %1165 = vrot.lane.b32.xlu0 %v1161, 16
          %v1166 = vpop.permute.xlu0 %1165
          %1167 = vrot.lane.b32.xlu0 %v1162, 16
          %v1168 = vpop.permute.xlu0 %1167
          %vm1171 = vcmask 195712
          %1172 = vst.msk [vmem:[#allocation5] sm:$0xff] %vm1171, %v1166
          %1173 = vst.msk [vmem:[#allocation5 + $0x8] sm:$0xff] %vm1171, %v1168
          %s1174 = scalar_lea.vmem [#allocation4], 48
          %v1175 = vld [vmem:[%s1174] sm:$0xff]
          %v1176 = vld [vmem:[%s1174 + $0x8] sm:$0xff]
          %1178 = vset.pattern.permute.xlu0 0
          %1179 = vperm.xlu0 %1178, %v1104
          %v1180 = vpop.permute.xlu0 %1179
          %1183 = vset.pattern.permute.xlu0 0
          %1184 = vperm.xlu0 %1183, %v1105
          %v1185 = vpop.permute.xlu0 %1184
          %v1187 = vmul.f32 %v1175, %v1180
          %v1188 = vmul.f32 %v1176, %v1185
          %1191 = vrot.lane.b32.xlu0 %v1187, 24
          %v1192 = vpop.permute.xlu0 %1191
          %1193 = vrot.lane.b32.xlu0 %v1188, 24
          %v1194 = vpop.permute.xlu0 %1193
          %vm1197 = vcmask 261312
          %1198 = vst.msk [vmem:[#allocation5] sm:$0xff] %vm1197, %v1192
          %1199 = vst.msk [vmem:[#allocation5 + $0x8] sm:$0xff] %vm1197, %v1194
          %v1200 = vld [vmem:[#allocation5] sm:$0xff]
          %v1201 = vld [vmem:[#allocation5 + $0x8] sm:$0xff]
          %v1202 = vpack.c.bf16 %v1201, %v1200
          %v1203 = vld [vmem:[%s3] sm:$0xf]
          %v1204 = vld [vmem:[%s3 + $0x4] sm:$0xf]
          %v1205 = vld [vmem:[%s3 + $0x8] sm:$0xf]
          %v1206 = vld [vmem:[%s3 + $0xc] sm:$0xf]
          %v1207 = vld [vmem:[%s4] sm:$0x1]
          %v1209 = vlaneseq
          %v1210 = vshrl.u32 %v1209, 7
          %v1211 = vsub.s32 0, %v1210
          %v1212 = vrot.slane %v1207, %v1211
          %v1218 = vunpack.c.l.b16 %v1203
          %v1219 = vunpack.c.l.b16 %v1204
          %v1220 = vunpack.c.l.b16 %v1205
          %v1221 = vunpack.c.l.b16 %v1206
          %v1222 = vpack.c.b16 %v1219, %v1218
          %v1223 = vpack.c.b16 %v1221, %v1220
          %vm1226 = vcmask 261120
          %v1228 = vsel %vm1226, %v1202, 0
          %1230 = vmatprep.subr.bf16.mxu0 0
          %1231 = vmatpush1.bf16.msra.mxu0 %v1222
          %1232 = vmatprep.subr.bf16.mxu0 0
          %1233 = vmatpush1.bf16.msra.mxu0 %v1223
          %1234 = vmatprep.subr.bf16.mxu0 0
          %1235 = vmatpush1.bf16.msra.mxu0 0
          %1236 = vmatprep.subr.bf16.mxu0 0
          %1237 = vmatpush1.bf16.msra.mxu0 0
          %1238 = vmatprep.subr.bf16.mxu0 0
          %1239 = vmatpush1.bf16.msra.mxu0 0
          %1240 = vmatprep.subr.bf16.mxu0 0
          %1241 = vmatpush1.bf16.msra.mxu0 0
          %1242 = vmatprep.subr.bf16.mxu0 0
          %1243 = vmatpush1.bf16.msra.mxu0 0
          %1244 = vmatprep.subr.bf16.mxu0 0
          %1245 = vmatpush1.bf16.msra.mxu0 0
          %1246 = vmatprep.subr.bf16.mxu0 0
          %1247 = vmatpush1.bf16.msra.mxu0 0
          %1248 = vmatprep.subr.bf16.mxu0 0
          %1249 = vmatpush1.bf16.msra.mxu0 0
          %1250 = vmatprep.subr.bf16.mxu0 0
          %1251 = vmatpush1.bf16.msra.mxu0 0
          %1252 = vmatprep.subr.bf16.mxu0 0
          %1253 = vmatpush1.bf16.msra.mxu0 0
          %1254 = vmatprep.subr.bf16.mxu0 0
          %1255 = vmatpush1.bf16.msra.mxu0 0
          %1256 = vmatprep.subr.bf16.mxu0 0
          %1257 = vmatpush1.bf16.msra.mxu0 0
          %1258 = vmatprep.subr.bf16.mxu0 0
          %1259 = vmatpush1.bf16.msra.mxu0 0
          %1260 = vmatprep.subr.bf16.mxu0 0
          %1261 = vmatpush1.bf16.msra.mxu0 0
          %1262 = vmatprep.mubr.bf16.mxu0 0
          %1263 = vmatmul.mubr.bf16.gmra.mrb[0].mxu0 %v1228
          %v1264 = vpop.f32.mrb[0].mxu0
          %v1265 = vadd.f32 %v1212, %v1264
          %v1266 = vpop.f32.mrb[0].mxu0
          %v1267 = vpop.f32.mrb[0].mxu0
          %v1268 = vadd.f32 %v1212, %v1267
          %v1269 = vpop.f32.mrb[0].mxu0
          %1270 = vdwg.mxu0
          %1271 = vst.msk [vmem:[%s301] sm:$0xff] %vm1226, %v1265
          %1272 = vst.msk [vmem:[%s301 + $0x8] sm:$0xff] %vm1226, %v1268
        $region48: #{eva_attention.3} parent=39 // pred_fallthru
          _
        %s1273 = sand.u32 %s174, 1
        %s1274 = scalar_lea.sflag [#allocation7], %s1273
        %s1275 = sand.u32 %s174, 1
        %s1276 = smul.addr %s1275, 16
        %s1277 = scalar_lea.vmem [#allocation6], %s1276
        // Predicated region
        $region49: #{eva_attention.3} parent=39 // pred_check
          %p1278 = pneg %p184
        $region50: #{eva_attention.3} parent=39 // pred_check_branch
          %1280 = sbr.rel (%p1278) target = $region52
        $region51: #{eva_attention.3} parent=39 // pred_region
          %s1281 = smul.u32 2, %s25
          %s1283 = ssub.s32 256, 256
          %1284 = vsyncadd %s1274, %s1283
          %s1285 = smul.addr %s24, 2
          %s1286 = sadd.s32 %s1281, %s1285
          %s1287 = smul.addr %s1286, 128
          %s1288 = scalar_lea.hbm %s5, %s1287
          %s1289 = sshll.u32 %s1277, 4
          %s1290 = int_to_ptr.vmem [resolvable:$true] %s1289
          %1295 = dma.vmem_to_hbm [thread:$0]  %s1290, 256, %s1288, %s1274, 128, 128, 8
        $region52: #{eva_attention.3} parent=39 // pred_fallthru
          _
      $region40: #{eva_attention.3} parent=5 // pred_fallthru
        _
      %p1296 = scmp.le.s32.totalorder 2, %s14
      // Predicated region
      $region53: #{eva_attention.3} parent=5 // pred_check
        %p1297 = pneg %p1296
      $region54: #{eva_attention.3} parent=5 // pred_check_branch
        %1299 = sbr.rel (%p1297) target = $region56
      $region55: #{eva_attention.3} parent=5 // pred_region
        %s1300 = ssub.s32 %s14, 2
        // Predicated region
        $region57: #{eva_attention.3} parent=55 // pred_check
          %p1301 = pneg %p190
        $region58: #{eva_attention.3} parent=55 // pred_check_branch
          %1303 = sbr.rel (%p1301) target = $region60
        $region59: #{eva_attention.3} parent=55 // pred_region
          %s1304 = sand.u32 %s175, 1
          %s1305 = scalar_lea.sflag [#allocation7], %s1304
          %s1306 = sand.u32 %s175, 1
          %s1307 = smul.addr %s1306, 16
          %s1308 = scalar_lea.vmem [#allocation6], %s1307
          %1309 = dma.done %s1305, 256
        $region60: #{eva_attention.3} parent=55 // pred_fallthru
          _
      $region56: #{eva_attention.3} parent=5 // pred_fallthru
        _
    $region6: #{eva_attention.3} parent=1 // loop_footer
      %s18 = sadd.s32 1, %s14
    $region7: #{eva_attention.3} parent=1 // loop_footer_branch
      %13 = sbr.rel target = $region3
    $region8: #{eva_attention.3} parent=1 // loop_exit
      _
    %1310 = vsyncpa [#allocation7], 1
    %s1311 = scalar_lea.sflag [#allocation7], 1
    %1312 = vsyncpa %s1311, 1

</llo_original>
